<compile_context>
chip_gen: v7x
topology: tpu7x:2x2x1
jax: 0.10.0
libtpu: 0.0.40
codegen_flags: <defaults>
</compile_context>

<pallas_src>
import functools
import math

import jax
import jax.numpy as jnp
from jax import lax
from jax.experimental import pallas as pl
from jax.experimental.pallas import tpu as pltpu

MM_DTYPE = jnp.bfloat16          # MXU operand dtype; accumulation is always f32.


def _round_up(n, m):
    return ((n + m - 1) // m) * m


@functools.lru_cache(maxsize=None)
def _vmem_limit_bytes():
    """Raised scoped-VMEM limit, bounded by the current chip's physical VMEM."""
    cap = 128 * 1024 * 1024
    try:
        cap = int(pltpu.get_tpu_info().vmem_capacity_bytes)
    except Exception:
        pass
    return int(min(96 * 1024 * 1024, (cap * 3) // 4))


def _layer_norm(x, gamma, beta, eps):
    """In-kernel LayerNorm matching the module: unbiased std (N-1), eps added to std.
    The divide is replaced by an EUP reciprocal + VPU multiply."""
    mean = jnp.mean(x, axis=-1, keepdims=True)
    diff = x - mean
    var = jnp.sum(diff * diff, axis=-1, keepdims=True) * (1.0 / (x.shape[-1] - 1))
    inv = pl.reciprocal(jnp.sqrt(var) + eps, approx=True)
    return gamma * (diff * inv) + beta


# ---------------------------------------------------------------------------
# Sublayer 0: pre-norm multi-head self-attention + residual
# grid = (batch, query_tiles); K/V computed once per batch row into scratch.
# ---------------------------------------------------------------------------
def _attn_sublayer_kernel(x_ref, bias_ref, wqkv_ref, wo_ref, par_ref,
                          y_ref, attn_ref,
                          q_sc, k_sc, v_sc, ao_sc,
                          *, num_heads, eps, tq):
    S, D = x_ref.shape
    H = num_heads
    d_k = D // H
    scale = 1.0 / math.sqrt(d_k)
    qi = pl.program_id(1)
    par = par_ref[...]                                   # (8, D) f32 packed params

    # Once per batch row: LayerNorm(x) and the fused QKV projection -> scratch.
    @pl.when(qi == 0)
    def _():
        x = x_ref[...]                                   # (S, D) f32
        n = _layer_norm(x, par[0:1, :], par[1:2, :], eps)
        qkv = jnp.dot(n.astype(MM_DTYPE), wqkv_ref[...],  # one (S,D)@(D,3D) matmul
                      preferred_element_type=jnp.float32)
        q_sc[...] = qkv[:, 0 * D:1 * D] + par[2:3, :]
        k_sc[...] = (qkv[:, 1 * D:2 * D] + par[3:4, :]).astype(MM_DTYPE)
        v_sc[...] = (qkv[:, 2 * D:3 * D] + par[4:5, :]).astype(MM_DTYPE)

    q_start = pl.multiple_of(qi * tq, tq)
    bias = bias_ref[...].astype(jnp.float32)             # (1|tq, 1|S) additive mask
    qt = q_sc[pl.ds(q_start, tq), :].astype(MM_DTYPE)    # (tq, D) query tile
    k_all = k_sc[...]
    v_all = v_sc[...]

    for h in range(H):                                   # static unroll over heads
        sl = slice(h * d_k, (h + 1) * d_k)
        # scores = q_h @ k_h^T (contract last dims; no explicit transpose)
        scores = lax.dot_general(qt[:, sl], k_all[:, sl],
                                 (((1,), (1,)), ((), ())),
                                 preferred_element_type=jnp.float32)
        scores = scores * scale + bias                   # additive mask bias
        m = jnp.max(scores, axis=-1, keepdims=True)
        e = jnp.exp(scores - m)
        r = pl.reciprocal(jnp.sum(e, axis=-1, keepdims=True), approx=True)
        p = e * r
        attn_ref[h] = p.astype(attn_ref.dtype)           # (tq, S)
        # Write this head's PV result straight into its slice of the output slab.
        ao_sc[:, sl] = jnp.dot(p.astype(MM_DTYPE), v_all[:, sl],
                               preferred_element_type=jnp.float32)

    o = jnp.dot(ao_sc[...].astype(MM_DTYPE), wo_ref[...],
                preferred_element_type=jnp.float32) + par[5:6, :]
    # nn.Dropout is identity at inference.
    y_ref[...] = (x_ref[pl.ds(q_start, tq), :] + o).astype(y_ref.dtype)


def _attention_sublayer(x, mask, wqkv, wo, par, *, num_heads, eps, q_tile,
                        attn_dtype):
    B, S, D = x.shape
    H = num_heads

    # Query tiling only when it divides S evenly (avoids sequence padding).
    if S > q_tile and q_tile % 8 == 0 and S % q_tile == 0:
        tq = q_tile
    else:
        tq = S
    n_qt = S // tq

    # Compact additive mask bias (0 keep, -1e9 drop) at the caller's broadcast shape,
    # so a key-padding mask only costs B*S elements of HBM traffic.
    assert mask.ndim == 3 and mask.shape[0] == B
    Qm, Km = mask.shape[1], mask.shape[2]
    assert Qm in (1, S) and Km in (1, S)
    bias = jnp.where(mask == 0, -1e9, 0.0).astype(MM_DTYPE)

    if Qm == 1:
        bias_spec = pl.BlockSpec((None, 1, Km), lambda b, qi: (b, 0, 0))
    else:
        bias_spec = pl.BlockSpec((None, tq, Km), lambda b, qi: (b, qi, 0))

    flops = B * (8 * S * D * D + 4 * S * S * D)
    transcendentals = B * H * S * S + B * S * (H + 1)
    attn_bytes = B * H * S * S * jnp.dtype(attn_dtype).itemsize
    bytes_accessed = (4 * 2 * B * S * D + 2 * B * Qm * Km
                      + 2 * (3 * D * D + D * D) + 4 * 8 * D + attn_bytes)

    kernel = functools.partial(_attn_sublayer_kernel, num_heads=H, eps=eps, tq=tq)

    y, attn = pl.pallas_call(
        kernel,
        out_shape=(jax.ShapeDtypeStruct((B, S, D), x.dtype),
                   jax.ShapeDtypeStruct((B, H, S, S), attn_dtype)),
        grid_spec=pltpu.PrefetchScalarGridSpec(
            num_scalar_prefetch=0,
            grid=(B, n_qt),
            in_specs=[
                # Full-sequence x: same block across query tiles -> stays resident.
                pl.BlockSpec((None, S, D), lambda b, qi: (b, 0, 0)),
                bias_spec,                                        # additive mask bias (bf16)
                pl.BlockSpec((D, 3 * D), lambda b, qi: (0, 0)),   # fused Wqkv (bf16)
                pl.BlockSpec((D, D), lambda b, qi: (0, 0)),       # Wo (bf16)
                pl.BlockSpec((8, D), lambda b, qi: (0, 0)),       # packed LN/bias params
            ],
            out_specs=[
                pl.BlockSpec((None, tq, D), lambda b, qi: (b, qi, 0)),
                pl.BlockSpec((None, H, tq, S), lambda b, qi: (b, 0, qi, 0)),
            ],
            scratch_shapes=[
                pltpu.VMEM((S, D), jnp.float32),   # Q (full sequence, reused per tile)
                pltpu.VMEM((S, D), MM_DTYPE),      # K
                pltpu.VMEM((S, D), MM_DTYPE),      # V
                pltpu.VMEM((tq, D), jnp.float32),  # per-tile PV output slab
            ],
        ),
        compiler_params=pltpu.CompilerParams(
            dimension_semantics=("parallel", "arbitrary"),
            vmem_limit_bytes=_vmem_limit_bytes()),
        cost_estimate=pl.CostEstimate(flops=flops,
                                      transcendentals=transcendentals,
                                      bytes_accessed=bytes_accessed),
    )(x, bias, wqkv, wo, par)
    return y, attn


# ---------------------------------------------------------------------------
# Sublayer 1: pre-norm position-wise feed-forward + residual (row-tiled grid)
# ---------------------------------------------------------------------------
def _ff_sublayer_kernel(x_ref, par_ref, w1_ref, b1_ref, w2_ref, o_ref, *, eps):
    x = x_ref[...]                                        # (tm, D) f32
    par = par_ref[...]                                    # (8, D) f32
    n = _layer_norm(x, par[0:1, :], par[1:2, :], eps)
    h = jnp.dot(n.astype(MM_DTYPE), w1_ref[...],
                preferred_element_type=jnp.float32) + b1_ref[...]
    h = jnp.maximum(h, 0.0)                               # ReLU
    f = jnp.dot(h.astype(MM_DTYPE), w2_ref[...],
                preferred_element_type=jnp.float32) + par[2:3, :]
    # nn.Dropout is identity at inference.
    o_ref[...] = (x + f).astype(o_ref.dtype)


def _ff_sublayer(x, w1, b1, w2, par, *, eps, tm):
    B, S, D = x.shape
    F = w1.shape[1]
    rows = B * S

    # Large row tile (MXU / roofline friendly); tail handled by zero padding.
    tm = min(tm, _round_up(rows, 8))
    n_tiles = pl.cdiv(rows, tm)
    rows_p = n_tiles * tm

    x2 = x.reshape(rows, D)
    if rows_p != rows:
        x2 = jnp.pad(x2, ((0, rows_p - rows), (0, 0)))

    flops = 4 * rows_p * D * F
    bytes_accessed = 4 * 2 * rows_p * D + 2 * 2 * D * F + 4 * (8 * D + F)

    out = pl.pallas_call(
        functools.partial(_ff_sublayer_kernel, eps=eps),
        out_shape=jax.ShapeDtypeStruct((rows_p, D), x.dtype),
        grid_spec=pltpu.PrefetchScalarGridSpec(
            num_scalar_prefetch=0,
            grid=(n_tiles,),
            in_specs=[
                pl.BlockSpec((tm, D), lambda i: (i, 0)),   # row tile
                pl.BlockSpec((8, D), lambda i: (0, 0)),    # packed ln2 gamma/beta + b2
                pl.BlockSpec((D, F), lambda i: (0, 0)),    # W1 (bf16)
                pl.BlockSpec((1, F), lambda i: (0, 0)),    # b1 (f32)
                pl.BlockSpec((F, D), lambda i: (0, 0)),    # W2 (bf16)
            ],
            out_specs=pl.BlockSpec((tm, D), lambda i: (i, 0)),
        ),
        compiler_params=pltpu.CompilerParams(
            dimension_semantics=("parallel",),
            vmem_limit_bytes=_vmem_limit_bytes()),
        cost_estimate=pl.CostEstimate(flops=flops, transcendentals=0,
                                      bytes_accessed=bytes_accessed),
    )(x2, par, w1, b1, w2)

    return out[:rows].reshape(B, S, D)


# ---------------------------------------------------------------------------
# Full EncoderLayer forward
# ---------------------------------------------------------------------------
@functools.partial(jax.jit,
                   static_argnames=("num_heads", "eps", "q_tile", "tm", "attn_dtype"))
def encoder_layer_forward(x, mask, params, *, num_heads, eps=1e-6,
                          q_tile=256, tm=512, attn_dtype=jnp.float32):
    """x: [B,S,D] f32.  mask: [B,1,S], [B,S,1] or [B,S,S] (0 => masked out).
    Returns (out [B,S,D], attn [B,H,S,S])."""
    B, S, D = x.shape
    F = params["w1"].shape[1]
    assert D % num_heads == 0

    # Pre-cast / pre-pack parameters once (bf16 weights; f32 biases & LN vectors).
    wqkv = jnp.concatenate([params["wq"], params["wk"], params["wv"]],
                           axis=1).astype(MM_DTYPE)            # (D, 3D)
    wo = params["wo"].astype(MM_DTYPE)
    w1 = params["w1"].astype(MM_DTYPE)
    w2 = params["w2"].astype(MM_DTYPE)

    def pack_rows(*rows):                                      # -> (8, D) f32
        stacked = jnp.stack([r.astype(jnp.float32) for r in rows], axis=0)
        return jnp.pad(stacked, ((0, 8 - len(rows)), (0, 0)))

    par_attn = pack_rows(params["ln1_a"], params["ln1_b"], params["bq"],
                         params["bk"], params["bv"], params["bo"])
    par_ff = pack_rows(params["ln2_a"], params["ln2_b"], params["b2"])
    b1 = params["b1"].reshape(1, F).astype(jnp.float32)

    y, attn = _attention_sublayer(x, mask, wqkv, wo, par_attn,
                                  num_heads=num_heads, eps=eps,
                                  q_tile=q_tile, attn_dtype=attn_dtype)
    out = _ff_sublayer(y, w1, b1, w2, par_ff, eps=eps, tm=tm)
    # TODO(synk): training-mode nn.Dropout is omitted (identity in eval); a Pallas
    # version would use pltpu.prng_seed / pltpu.prng_random_bits.
    return out, attn


# ---------------------------------------------------------------------------
# Pure-JAX reference (f32) for correctness checking
# ---------------------------------------------------------------------------
def _reference(x, mask, p, *, num_heads, eps=1e-6):
    B, S, D = x.shape
    H = num_heads
    d_k = D // H

    def ln(v, a, b):
        mean = v.mean(-1, keepdims=True)
        diff = v - mean
        var = jnp.sum(diff * diff, -1, keepdims=True) / (v.shape[-1] - 1)
        return a * diff / (jnp.sqrt(var) + eps) + b

    mask_b = jnp.broadcast_to(mask, (B, S, S))

    n = ln(x, p["ln1_a"], p["ln1_b"])
    q = n @ p["wq"] + p["bq"]
    k = n @ p["wk"] + p["bk"]
    v = n @ p["wv"] + p["bv"]
    qh = q.reshape(B, S, H, d_k).transpose(0, 2, 1, 3)
    kh = k.reshape(B, S, H, d_k).transpose(0, 2, 1, 3)
    vh = v.reshape(B, S, H, d_k).transpose(0, 2, 1, 3)
    scores = jnp.einsum("bhqd,bhkd->bhqk", qh, kh) / math.sqrt(d_k)
    scores = jnp.where(mask_b[:, None, :, :] == 0, -1e9, scores)
    attn = jax.nn.softmax(scores, axis=-1)
    o = jnp.einsum("bhqk,bhkd->bhqd", attn, vh)
    o = o.transpose(0, 2, 1, 3).reshape(B, S, D)
    y = x + (o @ p["wo"] + p["bo"])

    n2 = ln(y, p["ln2_a"], p["ln2_b"])
    f = jnp.maximum(n2 @ p["w1"] + p["b1"], 0.0) @ p["w2"] + p["b2"]
    return y + f, attn


def _check(name, out, attn, ref_out, ref_attn):
    assert out.shape == ref_out.shape and attn.shape == ref_attn.shape, name
    a32 = attn.astype(jnp.float32)
    # bf16 MXU operands with f32 accumulation + approx reciprocal -> loose-ish tol.
    assert jnp.allclose(out, ref_out, atol=7.5e-2, rtol=5e-2), \
        (name, float(jnp.max(jnp.abs(out - ref_out))))
    assert jnp.allclose(a32, ref_attn, atol=3e-2, rtol=3e-2), \
        (name, float(jnp.max(jnp.abs(a32 - ref_attn))))
    # Attention rows are (approximately, due to approx reciprocal) distributions.
    assert jnp.allclose(jnp.sum(a32, axis=-1), 1.0, atol=5e-3), name


if __name__ == "__main__":
    # Small shapes consistent with the module: d_model=32, 4 heads, d_ff=64.
    B, S, D, H, F = 2, 8, 32, 4, 64

    key = jax.random.PRNGKey(0)
    (kx, kx2, kwq, kbq, kwk, kbk, kwv, kbv, kwo, kbo,
     kw1, kb1, kw2, kb2) = jax.random.split(key, 14)

    def linear_init(kw, kb, fan_in, fan_out):
        bound = 1.0 / math.sqrt(fan_in)
        w = jax.random.uniform(kw, (fan_in, fan_out), jnp.float32, -bound, bound)
        b = jax.random.uniform(kb, (fan_out,), jnp.float32, -bound, bound)
        return w, b

    wq, bq = linear_init(kwq, kbq, D, D)
    wk, bk = linear_init(kwk, kbk, D, D)
    wv, bv = linear_init(kwv, kbv, D, D)
    wo, bo = linear_init(kwo, kbo, D, D)
    w1, b1 = linear_init(kw1, kb1, D, F)
    w2, b2 = linear_init(kw2, kb2, F, D)

    params = dict(
        ln1_a=jnp.ones((D,), jnp.float32), ln1_b=jnp.zeros((D,), jnp.float32),
        wq=wq, bq=bq, wk=wk, bk=bk, wv=wv, bv=bv, wo=wo, bo=bo,
        ln2_a=jnp.ones((D,), jnp.float32), ln2_b=jnp.zeros((D,), jnp.float32),
        w1=w1, b1=b1, w2=w2, b2=b2,
    )

    # ---- case 1: compact key-padding mask (B, 1, S) --------------------------
    x = jax.random.normal(kx, (B, S, D), jnp.float32)
    key_valid = jnp.array([[1.0] * S, [1.0] * (S - 2) + [0.0, 0.0]], jnp.float32)
    mask_pad = key_valid[:, None, :]                       # (B, 1, S)

    out, attn = encoder_layer_forward(x, mask_pad, params, num_heads=H)
    jax.block_until_ready((out, attn))
    ref_out, ref_attn = _reference(x, mask_pad, params, num_heads=H)
    assert out.shape == (B, S, D) and attn.shape == (B, H, S, S)
    _check("key-padding mask", out, attn, ref_out, ref_attn)

    # ---- case 2: dense per-query mask (B, S, S): causal * key padding --------
    causal = jnp.tril(jnp.ones((S, S), jnp.float32))
    mask_full = causal[None, :, :] * key_valid[:, None, :]
    out2, attn2 = encoder_layer_forward(x, mask_full, params, num_heads=H)
    jax.block_until_ready((out2, attn2))
    ref_out2, ref_attn2 = _reference(x, mask_full, params, num_heads=H)
    _check("dense mask", out2, attn2, ref_out2, ref_attn2)

    # ---- case 3: longer sequence exercising the multi-query-tile path --------
    S2 = 16
    x3 = jax.random.normal(kx2, (B, S2, D), jnp.float32)
    key_valid3 = jnp.concatenate(
        [jnp.ones((1, S2), jnp.float32),
         jnp.concatenate([jnp.ones((1, S2 - 3), jnp.float32),
                          jnp.zeros((1, 3), jnp.float32)], axis=1)], axis=0)
    mask3 = key_valid3[:, None, :]                         # (B, 1, S2)
    out3, attn3 = encoder_layer_forward(x3, mask3, params, num_heads=H, q_tile=8)
    jax.block_until_ready((out3, attn3))
    ref_out3, ref_attn3 = _reference(x3, mask3, params, num_heads=H)
    _check("query-tiled", out3, attn3, ref_out3, ref_attn3)

    print("KERNEL_OK")
</pallas_src>

<mosaic_0001>
module attributes {stable_mosaic.version = 11 : i64} {
  func.func @_ff_sublayer_kernel(%arg0: i32, %arg1: memref<16x32xf32, #tpu.memory_space<vmem>>, %arg2: memref<8x32xf32, #tpu.memory_space<vmem>>, %arg3: memref<32x64xbf16, #tpu.memory_space<vmem>>, %arg4: memref<1x64xf32, #tpu.memory_space<vmem>>, %arg5: memref<64x32xbf16, #tpu.memory_space<vmem>>, %arg6: memref<16x32xf32, #tpu.memory_space<vmem>>) attributes {dimension_semantics = [#tpu.dimension_semantics<parallel>], iteration_bounds = array<i64: 1>, scalar_prefetch = 0 : i64, scratch_operands = 0 : i64, tpu.core_type = #tpu.core_type<tc>, window_params = [{transform_indices = @transform_0, window_bounds = array<i64: 16, 32>}, {pipeline_mode = #tpu.pipeline_mode<synchronous>, transform_indices = @transform_1, window_bounds = array<i64: 8, 32>}, {pipeline_mode = #tpu.pipeline_mode<synchronous>, transform_indices = @transform_2, window_bounds = array<i64: 32, 64>}, {pipeline_mode = #tpu.pipeline_mode<synchronous>, transform_indices = @transform_3, window_bounds = array<i64: 1, 64>}, {pipeline_mode = #tpu.pipeline_mode<synchronous>, transform_indices = @transform_4, window_bounds = array<i64: 64, 32>}, {transform_indices = @transform_5, window_bounds = array<i64: 16, 32>}]} {
    %c0 = arith.constant 0 : index
    %c0_0 = arith.constant 0 : index
    %0 = vector.load %arg1[%c0, %c0_0] : memref<16x32xf32, #tpu.memory_space<vmem>>, vector<16x32xf32>
    %c0_1 = arith.constant 0 : index
    %c0_2 = arith.constant 0 : index
    %1 = vector.load %arg2[%c0_1, %c0_2] : memref<8x32xf32, #tpu.memory_space<vmem>>, vector<8x32xf32>
    %2 = vector.extract_strided_slice %1 {offsets = [0, 0], sizes = [1, 32], strides = [1, 1]} : vector<8x32xf32> to vector<1x32xf32>
    %3 = vector.extract_strided_slice %1 {offsets = [1, 0], sizes = [1, 32], strides = [1, 1]} : vector<8x32xf32> to vector<1x32xf32>
    %cst = arith.constant dense<0.000000e+00> : vector<16xf32>
    %4 = vector.multi_reduction <add>, %0, %cst [1] : vector<16x32xf32> to vector<16xf32>
    %5 = vector.shape_cast %4 : vector<16xf32> to vector<16x1xf32>
    %cst_3 = arith.constant 3.200000e+01 : f32
    %6 = vector.broadcast %cst_3 : f32 to vector<16x1xf32>
    %7 = arith.divf %5, %6 : vector<16x1xf32>
    %8 = vector.broadcast %7 : vector<16x1xf32> to vector<16x32xf32>
    %9 = arith.subf %0, %8 : vector<16x32xf32>
    %10 = arith.mulf %9, %9 : vector<16x32xf32>
    %cst_4 = arith.constant dense<0.000000e+00> : vector<16xf32>
    %11 = vector.multi_reduction <add>, %10, %cst_4 [1] : vector<16x32xf32> to vector<16xf32>
    %12 = vector.shape_cast %11 : vector<16xf32> to vector<16x1xf32>
    %cst_5 = arith.constant 0.0322580636 : f32
    %13 = vector.broadcast %cst_5 : f32 to vector<16x1xf32>
    %14 = arith.mulf %12, %13 : vector<16x1xf32>
    %15 = math.sqrt %14 : vector<16x1xf32>
    %cst_6 = arith.constant 9.99999997E-7 : f32
    %16 = vector.broadcast %cst_6 : f32 to vector<16x1xf32>
    %17 = arith.addf %15, %16 : vector<16x1xf32>
    %18 = tpu.reciprocal %17 {approx = true} : vector<16x1xf32> -> vector<16x1xf32>
    %19 = vector.broadcast %18 : vector<16x1xf32> to vector<16x32xf32>
    %20 = arith.mulf %9, %19 : vector<16x32xf32>
    %21 = vector.broadcast %2 : vector<1x32xf32> to vector<16x32xf32>
    %22 = arith.mulf %21, %20 : vector<16x32xf32>
    %23 = vector.broadcast %3 : vector<1x32xf32> to vector<16x32xf32>
    %24 = arith.addf %22, %23 : vector<16x32xf32>
    %25 = arith.truncf %24 : vector<16x32xf32> to vector<16x32xbf16>
    %c0_7 = arith.constant 0 : index
    %c0_8 = arith.constant 0 : index
    %26 = vector.load %arg3[%c0_7, %c0_8] : memref<32x64xbf16, #tpu.memory_space<vmem>>, vector<32x64xbf16>
    %cst_9 = arith.constant dense<0.000000e+00> : vector<16x64xf32>
    %27 = tpu.matmul %25, %26, %cst_9 {dimension_numbers = #tpu.dot_dimension_numbers<[1], [0], [0], [1], [0, 0, 1, 1], [], []>} : vector<16x32xbf16>, vector<32x64xbf16>, vector<16x64xf32> -> vector<16x64xf32>
    %c0_10 = arith.constant 0 : index
    %c0_11 = arith.constant 0 : index
    %28 = vector.load %arg4[%c0_10, %c0_11] : memref<1x64xf32, #tpu.memory_space<vmem>>, vector<1x64xf32>
    %29 = vector.broadcast %28 : vector<1x64xf32> to vector<16x64xf32>
    %30 = arith.addf %27, %29 : vector<16x64xf32>
    %cst_12 = arith.constant 0.000000e+00 : f32
    %31 = vector.broadcast %cst_12 : f32 to vector<16x64xf32>
    %32 = arith.maximumf %30, %31 : vector<16x64xf32>
    %33 = arith.truncf %32 : vector<16x64xf32> to vector<16x64xbf16>
    %c0_13 = arith.constant 0 : index
    %c0_14 = arith.constant 0 : index
    %34 = vector.load %arg5[%c0_13, %c0_14] : memref<64x32xbf16, #tpu.memory_space<vmem>>, vector<64x32xbf16>
    %cst_15 = arith.constant dense<0.000000e+00> : vector<16x32xf32>
    %35 = tpu.matmul %33, %34, %cst_15 {dimension_numbers = #tpu.dot_dimension_numbers<[1], [0], [0], [1], [0, 0, 1, 1], [], []>} : vector<16x64xbf16>, vector<64x32xbf16>, vector<16x32xf32> -> vector<16x32xf32>
    %36 = vector.extract_strided_slice %1 {offsets = [2, 0], sizes = [1, 32], strides = [1, 1]} : vector<8x32xf32> to vector<1x32xf32>
    %37 = vector.broadcast %36 : vector<1x32xf32> to vector<16x32xf32>
    %38 = arith.addf %35, %37 : vector<16x32xf32>
    %39 = arith.addf %0, %38 : vector<16x32xf32>
    %c0_16 = arith.constant 0 : index
    %c0_17 = arith.constant 0 : index
    %40 = vector.load %arg6[%c0_16, %c0_17] : memref<16x32xf32, #tpu.memory_space<vmem>>, vector<16x32xf32>
    tpu.vector_store %arg6[%c0_16, %c0_17], %39 {strides = array<i32>} : memref<16x32xf32, #tpu.memory_space<vmem>>, vector<16x32xf32>,
    return
  }
  func.func @transform_0(%arg0: i32) -> (i32, i32) {
    %c0_i32 = arith.constant 0 : i32
    %c0_i32_0 = arith.constant 0 : i32
    return %arg0, %c0_i32 : i32, i32
  }
  func.func @transform_1(%arg0: i32) -> (i32, i32) {
    %c0_i32 = arith.constant 0 : i32
    %c0_i32_0 = arith.constant 0 : i32
    %c0_i32_1 = arith.constant 0 : i32
    return %c0_i32, %c0_i32_0 : i32, i32
  }
  func.func @transform_2(%arg0: i32) -> (i32, i32) {
    %c0_i32 = arith.constant 0 : i32
    %c0_i32_0 = arith.constant 0 : i32
    %c0_i32_1 = arith.constant 0 : i32
    return %c0_i32, %c0_i32_0 : i32, i32
  }
  func.func @transform_3(%arg0: i32) -> (i32, i32) {
    %c0_i32 = arith.constant 0 : i32
    %c0_i32_0 = arith.constant 0 : i32
    %c0_i32_1 = arith.constant 0 : i32
    return %c0_i32, %c0_i32_0 : i32, i32
  }
  func.func @transform_4(%arg0: i32) -> (i32, i32) {
    %c0_i32 = arith.constant 0 : i32
    %c0_i32_0 = arith.constant 0 : i32
    %c0_i32_1 = arith.constant 0 : i32
    return %c0_i32, %c0_i32_0 : i32, i32
  }
  func.func @transform_5(%arg0: i32) -> (i32, i32) {
    %c0_i32 = arith.constant 0 : i32
    %c0_i32_0 = arith.constant 0 : i32
    return %arg0, %c0_i32 : i32, i32
  }
}

module attributes {stable_mosaic.version = 11 : i64} {
  func.func @_attn_sublayer_kernel(%arg0: i32, %arg1: i32, %arg2: memref<1x8x32xf32, #tpu.memory_space<vmem>>, %arg3: memref<1x1x8xbf16, #tpu.memory_space<vmem>>, %arg4: memref<32x96xbf16, #tpu.memory_space<vmem>>, %arg5: memref<32x32xbf16, #tpu.memory_space<vmem>>, %arg6: memref<8x32xf32, #tpu.memory_space<vmem>>, %arg7: memref<1x8x32xf32, #tpu.memory_space<vmem>>, %arg8: memref<1x4x8x8xf32, #tpu.memory_space<vmem>>, %arg9: memref<8x32xf32, #tpu.memory_space<vmem>>, %arg10: memref<8x32xbf16, #tpu.memory_space<vmem>>, %arg11: memref<8x32xbf16, #tpu.memory_space<vmem>>, %arg12: memref<8x32xf32, #tpu.memory_space<vmem>>) attributes {dimension_semantics = [#tpu.dimension_semantics<parallel>, #tpu.dimension_semantics<arbitrary>], iteration_bounds = array<i64: 2, 1>, scalar_prefetch = 0 : i64, scratch_operands = 4 : i64, tpu.core_type = #tpu.core_type<tc>, window_params = [{transform_indices = @transform_0, window_bounds = array<i64: 1, 8, 32>}, {transform_indices = @transform_1, window_bounds = array<i64: 1, 1, 8>}, {pipeline_mode = #tpu.pipeline_mode<synchronous>, transform_indices = @transform_2, window_bounds = array<i64: 32, 96>}, {pipeline_mode = #tpu.pipeline_mode<synchronous>, transform_indices = @transform_3, window_bounds = array<i64: 32, 32>}, {pipeline_mode = #tpu.pipeline_mode<synchronous>, transform_indices = @transform_4, window_bounds = array<i64: 8, 32>}, {transform_indices = @transform_5, window_bounds = array<i64: 1, 8, 32>}, {transform_indices = @transform_6, window_bounds = array<i64: 1, 4, 8, 8>}]} {
    %c0 = arith.constant 0 : index
    %c0_0 = arith.constant 0 : index
    %0 = vector.load %arg6[%c0, %c0_0] : memref<8x32xf32, #tpu.memory_space<vmem>>, vector<8x32xf32>
    %c0_i32 = arith.constant 0 : i32
    %1 = arith.cmpi eq, %arg1, %c0_i32 : i32
    %2 = arith.extui %1 : i1 to i32
    %c0_i32_1 = arith.constant 0 : i32
    %3 = arith.cmpi ne, %2, %c0_i32_1 : i32
    scf.if %3 {
      %c0_57 = arith.constant 0 : index
      %c0_58 = arith.constant 0 : index
      %c0_59 = arith.constant 0 : index
      %124 = vector.load %arg2[%c0_57, %c0_58, %c0_59] : memref<1x8x32xf32, #tpu.memory_space<vmem>>, vector<1x8x32xf32>
      %125 = vector.shape_cast %124 : vector<1x8x32xf32> to vector<8x32xf32>
      %126 = vector.extract_strided_slice %0 {offsets = [0, 0], sizes = [1, 32], strides = [1, 1]} : vector<8x32xf32> to vector<1x32xf32>
      %127 = vector.extract_strided_slice %0 {offsets = [1, 0], sizes = [1, 32], strides = [1, 1]} : vector<8x32xf32> to vector<1x32xf32>
      %cst_60 = arith.constant dense<0.000000e+00> : vector<8xf32>
      %128 = vector.multi_reduction <add>, %125, %cst_60 [1] : vector<8x32xf32> to vector<8xf32>
      %129 = vector.shape_cast %128 : vector<8xf32> to vector<8x1xf32>
      %cst_61 = arith.constant 3.200000e+01 : f32
      %130 = vector.broadcast %cst_61 : f32 to vector<8x1xf32>
      %131 = arith.divf %129, %130 : vector<8x1xf32>
      %132 = vector.broadcast %131 : vector<8x1xf32> to vector<8x32xf32>
      %133 = arith.subf %125, %132 : vector<8x32xf32>
      %134 = arith.mulf %133, %133 : vector<8x32xf32>
      %cst_62 = arith.constant dense<0.000000e+00> : vector<8xf32>
      %135 = vector.multi_reduction <add>, %134, %cst_62 [1] : vector<8x32xf32> to vector<8xf32>
      %136 = vector.shape_cast %135 : vector<8xf32> to vector<8x1xf32>
      %cst_63 = arith.constant 0.0322580636 : f32
      %137 = vector.broadcast %cst_63 : f32 to vector<8x1xf32>
      %138 = arith.mulf %136, %137 : vector<8x1xf32>
      %139 = math.sqrt %138 : vector<8x1xf32>
      %cst_64 = arith.constant 9.99999997E-7 : f32
      %140 = vector.broadcast %cst_64 : f32 to vector<8x1xf32>
      %141 = arith.addf %139, %140 : vector<8x1xf32>
      %142 = tpu.reciprocal %141 {approx = true} : vector<8x1xf32> -> vector<8x1xf32>
      %143 = vector.broadcast %142 : vector<8x1xf32> to vector<8x32xf32>
      %144 = arith.mulf %133, %143 : vector<8x32xf32>
      %145 = vector.broadcast %126 : vector<1x32xf32> to vector<8x32xf32>
      %146 = arith.mulf %145, %144 : vector<8x32xf32>
      %147 = vector.broadcast %127 : vector<1x32xf32> to vector<8x32xf32>
      %148 = arith.addf %146, %147 : vector<8x32xf32>
      %149 = arith.truncf %148 : vector<8x32xf32> to vector<8x32xbf16>
      %c0_65 = arith.constant 0 : index
      %c0_66 = arith.constant 0 : index
      %150 = vector.load %arg4[%c0_65, %c0_66] : memref<32x96xbf16, #tpu.memory_space<vmem>>, vector<32x96xbf16>
      %cst_67 = arith.constant dense<0.000000e+00> : vector<8x96xf32>
      %151 = tpu.matmul %149, %150, %cst_67 {dimension_numbers = #tpu.dot_dimension_numbers<[1], [0], [0], [1], [0, 0, 1, 1], [], []>} : vector<8x32xbf16>, vector<32x96xbf16>, vector<8x96xf32> -> vector<8x96xf32>
      %152 = vector.extract_strided_slice %151 {offsets = [0, 0], sizes = [8, 32], strides = [1, 1]} : vector<8x96xf32> to vector<8x32xf32>
      %153 = vector.extract_strided_slice %0 {offsets = [2, 0], sizes = [1, 32], strides = [1, 1]} : vector<8x32xf32> to vector<1x32xf32>
      %154 = vector.broadcast %153 : vector<1x32xf32> to vector<8x32xf32>
      %155 = arith.addf %152, %154 : vector<8x32xf32>
      %c0_68 = arith.constant 0 : index
      %c0_69 = arith.constant 0 : index
      %156 = vector.load %arg9[%c0_68, %c0_69] : memref<8x32xf32, #tpu.memory_space<vmem>>, vector<8x32xf32>
      tpu.vector_store %arg9[%c0_68, %c0_69], %155 {strides = array<i32>} : memref<8x32xf32, #tpu.memory_space<vmem>>, vector<8x32xf32>,
      %157 = vector.extract_strided_slice %151 {offsets = [0, 32], sizes = [8, 32], strides = [1, 1]} : vector<8x96xf32> to vector<8x32xf32>
      %158 = vector.extract_strided_slice %0 {offsets = [3, 0], sizes = [1, 32], strides = [1, 1]} : vector<8x32xf32> to vector<1x32xf32>
      %159 = vector.broadcast %158 : vector<1x32xf32> to vector<8x32xf32>
      %160 = arith.addf %157, %159 : vector<8x32xf32>
      %161 = arith.truncf %160 : vector<8x32xf32> to vector<8x32xbf16>
      %c0_70 = arith.constant 0 : index
      %c0_71 = arith.constant 0 : index
      %162 = vector.load %arg10[%c0_70, %c0_71] : memref<8x32xbf16, #tpu.memory_space<vmem>>, vector<8x32xbf16>
      tpu.vector_store %arg10[%c0_70, %c0_71], %161 {strides = array<i32>} : memref<8x32xbf16, #tpu.memory_space<vmem>>, vector<8x32xbf16>,
      %163 = vector.extract_strided_slice %151 {offsets = [0, 64], sizes = [8, 32], strides = [1, 1]} : vector<8x96xf32> to vector<8x32xf32>
      %164 = vector.extract_strided_slice %0 {offsets = [4, 0], sizes = [1, 32], strides = [1, 1]} : vector<8x32xf32> to vector<1x32xf32>
      %165 = vector.broadcast %164 : vector<1x32xf32> to vector<8x32xf32>
      %166 = arith.addf %163, %165 : vector<8x32xf32>
      %167 = arith.truncf %166 : vector<8x32xf32> to vector<8x32xbf16>
      %c0_72 = arith.constant 0 : index
      %c0_73 = arith.constant 0 : index
      %168 = vector.load %arg11[%c0_72, %c0_73] : memref<8x32xbf16, #tpu.memory_space<vmem>>, vector<8x32xbf16>
      tpu.vector_store %arg11[%c0_72, %c0_73], %167 {strides = array<i32>} : memref<8x32xbf16, #tpu.memory_space<vmem>>, vector<8x32xbf16>,
    } else {
    }
    %c8_i32 = arith.constant 8 : i32
    %4 = arith.muli %arg1, %c8_i32 : i32
    %5 = tpu.assume_multiple %4, 8 : i32
    %c0_2 = arith.constant 0 : index
    %c0_3 = arith.constant 0 : index
    %c0_4 = arith.constant 0 : index
    %6 = vector.load %arg3[%c0_2, %c0_3, %c0_4] : memref<1x1x8xbf16, #tpu.memory_space<vmem>>, vector<1x1x8xbf16>
    %7 = vector.shape_cast %6 : vector<1x1x8xbf16> to vector<1x8xbf16>
    %8 = arith.extf %7 : vector<1x8xbf16> to vector<1x8xf32>
    %9 = arith.index_cast %5 : i32 to index
    %c0_5 = arith.constant 0 : index
    %10 = vector.load %arg9[%9, %c0_5] : memref<8x32xf32, #tpu.memory_space<vmem>>, vector<8x32xf32>
    %11 = arith.truncf %10 : vector<8x32xf32> to vector<8x32xbf16>
    %c0_6 = arith.constant 0 : index
    %c0_7 = arith.constant 0 : index
    %12 = vector.load %arg10[%c0_6, %c0_7] : memref<8x32xbf16, #tpu.memory_space<vmem>>, vector<8x32xbf16>
    %c0_8 = arith.constant 0 : index
    %c0_9 = arith.constant 0 : index
    %13 = vector.load %arg11[%c0_8, %c0_9] : memref<8x32xbf16, #tpu.memory_space<vmem>>, vector<8x32xbf16>
    %14 = vector.extract_strided_slice %11 {offsets = [0, 0], sizes = [8, 8], strides = [1, 1]} : vector<8x32xbf16> to vector<8x8xbf16>
    %15 = vector.extract_strided_slice %12 {offsets = [0, 0], sizes = [8, 8], strides = [1, 1]} : vector<8x32xbf16> to vector<8x8xbf16>
    %cst = arith.constant dense<0.000000e+00> : vector<8x8xf32>
    %16 = tpu.matmul %14, %15, %cst {dimension_numbers = #tpu.dot_dimension_numbers<[1], [1], [0], [0], [0, 0, 1, 0], [], []>} : vector<8x8xbf16>, vector<8x8xbf16>, vector<8x8xf32> -> vector<8x8xf32>
    %cst_10 = arith.constant 0.353553385 : f32
    %17 = vector.broadcast %cst_10 : f32 to vector<8x8xf32>
    %18 = arith.mulf %16, %17 : vector<8x8xf32>
    %19 = vector.broadcast %8 : vector<1x8xf32> to vector<8x8xf32>
    %20 = arith.addf %18, %19 : vector<8x8xf32>
    %cst_11 = arith.constant dense<0xFF800000> : vector<8xf32>
    %21 = vector.multi_reduction <maximumf>, %20, %cst_11 [1] : vector<8x8xf32> to vector<8xf32>
    %22 = vector.shape_cast %21 : vector<8xf32> to vector<8x1xf32>
    %23 = vector.broadcast %22 : vector<8x1xf32> to vector<8x8xf32>
    %24 = arith.subf %20, %23 : vector<8x8xf32>
    %25 = math.exp %24 : vector<8x8xf32>
    %cst_12 = arith.constant dense<0.000000e+00> : vector<8xf32>
    %26 = vector.multi_reduction <add>, %25, %cst_12 [1] : vector<8x8xf32> to vector<8xf32>
    %27 = vector.shape_cast %26 : vector<8xf32> to vector<8x1xf32>
    %28 = tpu.reciprocal %27 {approx = true} : vector<8x1xf32> -> vector<8x1xf32>
    %29 = vector.broadcast %28 : vector<8x1xf32> to vector<8x8xf32>
    %30 = arith.mulf %25, %29 : vector<8x8xf32>
    %c0_13 = arith.constant 0 : index
    %c0_14 = arith.constant 0 : index
    %c0_15 = arith.constant 0 : index
    %c0_16 = arith.constant 0 : index
    %31 = vector.load %arg8[%c0_13, %c0_14, %c0_15, %c0_16] : memref<1x4x8x8xf32, #tpu.memory_space<vmem>>, vector<1x1x8x8xf32>
    %32 = vector.shape_cast %31 : vector<1x1x8x8xf32> to vector<8x8xf32>
    %33 = vector.shape_cast %30 : vector<8x8xf32> to vector<1x1x8x8xf32>
    tpu.vector_store %arg8[%c0_13, %c0_14, %c0_15, %c0_16], %33 {strides = array<i32>} : memref<1x4x8x8xf32, #tpu.memory_space<vmem>>, vector<1x1x8x8xf32>,
    %34 = arith.truncf %30 : vector<8x8xf32> to vector<8x8xbf16>
    %35 = vector.extract_strided_slice %13 {offsets = [0, 0], sizes = [8, 8], strides = [1, 1]} : vector<8x32xbf16> to vector<8x8xbf16>
    %cst_17 = arith.constant dense<0.000000e+00> : vector<8x8xf32>
    %36 = tpu.matmul %34, %35, %cst_17 {dimension_numbers = #tpu.dot_dimension_numbers<[1], [0], [0], [1], [0, 0, 1, 1], [], []>} : vector<8x8xbf16>, vector<8x8xbf16>, vector<8x8xf32> -> vector<8x8xf32>
    %c0_18 = arith.constant 0 : index
    %c0_19 = arith.constant 0 : index
    %37 = vector.load %arg12[%c0_18, %c0_19] : memref<8x32xf32, #tpu.memory_space<vmem>>, vector<8x8xf32>
    tpu.vector_store %arg12[%c0_18, %c0_19], %36 {strides = array<i32>} : memref<8x32xf32, #tpu.memory_space<vmem>>, vector<8x8xf32>,
    %38 = vector.extract_strided_slice %11 {offsets = [0, 8], sizes = [8, 8], strides = [1, 1]} : vector<8x32xbf16> to vector<8x8xbf16>
    %39 = vector.extract_strided_slice %12 {offsets = [0, 8], sizes = [8, 8], strides = [1, 1]} : vector<8x32xbf16> to vector<8x8xbf16>
    %cst_20 = arith.constant dense<0.000000e+00> : vector<8x8xf32>
    %40 = tpu.matmul %38, %39, %cst_20 {dimension_numbers = #tpu.dot_dimension_numbers<[1], [1], [0], [0], [0, 0, 1, 0], [], []>} : vector<8x8xbf16>, vector<8x8xbf16>, vector<8x8xf32> -> vector<8x8xf32>
    %cst_21 = arith.constant 0.353553385 : f32
    %41 = vector.broadcast %cst_21 : f32 to vector<8x8xf32>
    %42 = arith.mulf %40, %41 : vector<8x8xf32>
    %43 = vector.broadcast %8 : vector<1x8xf32> to vector<8x8xf32>
    %44 = arith.addf %42, %43 : vector<8x8xf32>
    %cst_22 = arith.constant dense<0xFF800000> : vector<8xf32>
    %45 = vector.multi_reduction <maximumf>, %44, %cst_22 [1] : vector<8x8xf32> to vector<8xf32>
    %46 = vector.shape_cast %45 : vector<8xf32> to vector<8x1xf32>
    %47 = vector.broadcast %46 : vector<8x1xf32> to vector<8x8xf32>
    %48 = arith.subf %44, %47 : vector<8x8xf32>
    %49 = math.exp %48 : vector<8x8xf32>
    %cst_23 = arith.constant dense<0.000000e+00> : vector<8xf32>
    %50 = vector.multi_reduction <add>, %49, %cst_23 [1] : vector<8x8xf32> to vector<8xf32>
    %51 = vector.shape_cast %50 : vector<8xf32> to vector<8x1xf32>
    %52 = tpu.reciprocal %51 {approx = true} : vector<8x1xf32> -> vector<8x1xf32>
    %53 = vector.broadcast %52 : vector<8x1xf32> to vector<8x8xf32>
    %54 = arith.mulf %49, %53 : vector<8x8xf32>
    %c0_24 = arith.constant 0 : index
    %c1 = arith.constant 1 : index
    %c0_25 = arith.constant 0 : index
    %c0_26 = arith.constant 0 : index
    %55 = vector.load %arg8[%c0_24, %c1, %c0_25, %c0_26] : memref<1x4x8x8xf32, #tpu.memory_space<vmem>>, vector<1x1x8x8xf32>
    %56 = vector.shape_cast %55 : vector<1x1x8x8xf32> to vector<8x8xf32>
    %57 = vector.shape_cast %54 : vector<8x8xf32> to vector<1x1x8x8xf32>
    tpu.vector_store %arg8[%c0_24, %c1, %c0_25, %c0_26], %57 {strides = array<i32>} : memref<1x4x8x8xf32, #tpu.memory_space<vmem>>, vector<1x1x8x8xf32>,
    %58 = arith.truncf %54 : vector<8x8xf32> to vector<8x8xbf16>
    %59 = vector.extract_strided_slice %13 {offsets = [0, 8], sizes = [8, 8], strides = [1, 1]} : vector<8x32xbf16> to vector<8x8xbf16>
    %cst_27 = arith.constant dense<0.000000e+00> : vector<8x8xf32>
    %60 = tpu.matmul %58, %59, %cst_27 {dimension_numbers = #tpu.dot_dimension_numbers<[1], [0], [0], [1], [0, 0, 1, 1], [], []>} : vector<8x8xbf16>, vector<8x8xbf16>, vector<8x8xf32> -> vector<8x8xf32>
    %c0_28 = arith.constant 0 : index
    %c8 = arith.constant 8 : index
    %61 = vector.load %arg12[%c0_28, %c8] : memref<8x32xf32, #tpu.memory_space<vmem>>, vector<8x8xf32>
    tpu.vector_store %arg12[%c0_28, %c8], %60 {strides = array<i32>} : memref<8x32xf32, #tpu.memory_space<vmem>>, vector<8x8xf32>,
    %62 = vector.extract_strided_slice %11 {offsets = [0, 16], sizes = [8, 8], strides = [1, 1]} : vector<8x32xbf16> to vector<8x8xbf16>
    %63 = vector.extract_strided_slice %12 {offsets = [0, 16], sizes = [8, 8], strides = [1, 1]} : vector<8x32xbf16> to vector<8x8xbf16>
    %cst_29 = arith.constant dense<0.000000e+00> : vector<8x8xf32>
    %64 = tpu.matmul %62, %63, %cst_29 {dimension_numbers = #tpu.dot_dimension_numbers<[1], [1], [0], [0], [0, 0, 1, 0], [], []>} : vector<8x8xbf16>, vector<8x8xbf16>, vector<8x8xf32> -> vector<8x8xf32>
    %cst_30 = arith.constant 0.353553385 : f32
    %65 = vector.broadcast %cst_30 : f32 to vector<8x8xf32>
    %66 = arith.mulf %64, %65 : vector<8x8xf32>
    %67 = vector.broadcast %8 : vector<1x8xf32> to vector<8x8xf32>
    %68 = arith.addf %66, %67 : vector<8x8xf32>
    %cst_31 = arith.constant dense<0xFF800000> : vector<8xf32>
    %69 = vector.multi_reduction <maximumf>, %68, %cst_31 [1] : vector<8x8xf32> to vector<8xf32>
    %70 = vector.shape_cast %69 : vector<8xf32> to vector<8x1xf32>
    %71 = vector.broadcast %70 : vector<8x1xf32> to vector<8x8xf32>
    %72 = arith.subf %68, %71 : vector<8x8xf32>
    %73 = math.exp %72 : vector<8x8xf32>
    %cst_32 = arith.constant dense<0.000000e+00> : vector<8xf32>
    %74 = vector.multi_reduction <add>, %73, %cst_32 [1] : vector<8x8xf32> to vector<8xf32>
    %75 = vector.shape_cast %74 : vector<8xf32> to vector<8x1xf32>
    %76 = tpu.reciprocal %75 {approx = true} : vector<8x1xf32> -> vector<8x1xf32>
    %77 = vector.broadcast %76 : vector<8x1xf32> to vector<8x8xf32>
    %78 = arith.mulf %73, %77 : vector<8x8xf32>
    %c0_33 = arith.constant 0 : index
    %c2 = arith.constant 2 : index
    %c0_34 = arith.constant 0 : index
    %c0_35 = arith.constant 0 : index
    %79 = vector.load %arg8[%c0_33, %c2, %c0_34, %c0_35] : memref<1x4x8x8xf32, #tpu.memory_space<vmem>>, vector<1x1x8x8xf32>
    %80 = vector.shape_cast %79 : vector<1x1x8x8xf32> to vector<8x8xf32>
    %81 = vector.shape_cast %78 : vector<8x8xf32> to vector<1x1x8x8xf32>
    tpu.vector_store %arg8[%c0_33, %c2, %c0_34, %c0_35], %81 {strides = array<i32>} : memref<1x4x8x8xf32, #tpu.memory_space<vmem>>, vector<1x1x8x8xf32>,
    %82 = arith.truncf %78 : vector<8x8xf32> to vector<8x8xbf16>
    %83 = vector.extract_strided_slice %13 {offsets = [0, 16], sizes = [8, 8], strides = [1, 1]} : vector<8x32xbf16> to vector<8x8xbf16>
    %cst_36 = arith.constant dense<0.000000e+00> : vector<8x8xf32>
    %84 = tpu.matmul %82, %83, %cst_36 {dimension_numbers = #tpu.dot_dimension_numbers<[1], [0], [0], [1], [0, 0, 1, 1], [], []>} : vector<8x8xbf16>, vector<8x8xbf16>, vector<8x8xf32> -> vector<8x8xf32>
    %c0_37 = arith.constant 0 : index
    %c16 = arith.constant 16 : index
    %85 = vector.load %arg12[%c0_37, %c16] : memref<8x32xf32, #tpu.memory_space<vmem>>, vector<8x8xf32>
    tpu.vector_store %arg12[%c0_37, %c16], %84 {strides = array<i32>} : memref<8x32xf32, #tpu.memory_space<vmem>>, vector<8x8xf32>,
    %86 = vector.extract_strided_slice %11 {offsets = [0, 24], sizes = [8, 8], strides = [1, 1]} : vector<8x32xbf16> to vector<8x8xbf16>
    %87 = vector.extract_strided_slice %12 {offsets = [0, 24], sizes = [8, 8], strides = [1, 1]} : vector<8x32xbf16> to vector<8x8xbf16>
    %cst_38 = arith.constant dense<0.000000e+00> : vector<8x8xf32>
    %88 = tpu.matmul %86, %87, %cst_38 {dimension_numbers = #tpu.dot_dimension_numbers<[1], [1], [0], [0], [0, 0, 1, 0], [], []>} : vector<8x8xbf16>, vector<8x8xbf16>, vector<8x8xf32> -> vector<8x8xf32>
    %cst_39 = arith.constant 0.353553385 : f32
    %89 = vector.broadcast %cst_39 : f32 to vector<8x8xf32>
    %90 = arith.mulf %88, %89 : vector<8x8xf32>
    %91 = vector.broadcast %8 : vector<1x8xf32> to vector<8x8xf32>
    %92 = arith.addf %90, %91 : vector<8x8xf32>
    %cst_40 = arith.constant dense<0xFF800000> : vector<8xf32>
    %93 = vector.multi_reduction <maximumf>, %92, %cst_40 [1] : vector<8x8xf32> to vector<8xf32>
    %94 = vector.shape_cast %93 : vector<8xf32> to vector<8x1xf32>
    %95 = vector.broadcast %94 : vector<8x1xf32> to vector<8x8xf32>
    %96 = arith.subf %92, %95 : vector<8x8xf32>
    %97 = math.exp %96 : vector<8x8xf32>
    %cst_41 = arith.constant dense<0.000000e+00> : vector<8xf32>
    %98 = vector.multi_reduction <add>, %97, %cst_41 [1] : vector<8x8xf32> to vector<8xf32>
    %99 = vector.shape_cast %98 : vector<8xf32> to vector<8x1xf32>
    %100 = tpu.reciprocal %99 {approx = true} : vector<8x1xf32> -> vector<8x1xf32>
    %101 = vector.broadcast %100 : vector<8x1xf32> to vector<8x8xf32>
    %102 = arith.mulf %97, %101 : vector<8x8xf32>
    %c0_42 = arith.constant 0 : index
    %c3 = arith.constant 3 : index
    %c0_43 = arith.constant 0 : index
    %c0_44 = arith.constant 0 : index
    %103 = vector.load %arg8[%c0_42, %c3, %c0_43, %c0_44] : memref<1x4x8x8xf32, #tpu.memory_space<vmem>>, vector<1x1x8x8xf32>
    %104 = vector.shape_cast %103 : vector<1x1x8x8xf32> to vector<8x8xf32>
    %105 = vector.shape_cast %102 : vector<8x8xf32> to vector<1x1x8x8xf32>
    tpu.vector_store %arg8[%c0_42, %c3, %c0_43, %c0_44], %105 {strides = array<i32>} : memref<1x4x8x8xf32, #tpu.memory_space<vmem>>, vector<1x1x8x8xf32>,
    %106 = arith.truncf %102 : vector<8x8xf32> to vector<8x8xbf16>
    %107 = vector.extract_strided_slice %13 {offsets = [0, 24], sizes = [8, 8], strides = [1, 1]} : vector<8x32xbf16> to vector<8x8xbf16>
    %cst_45 = arith.constant dense<0.000000e+00> : vector<8x8xf32>
    %108 = tpu.matmul %106, %107, %cst_45 {dimension_numbers = #tpu.dot_dimension_numbers<[1], [0], [0], [1], [0, 0, 1, 1], [], []>} : vector<8x8xbf16>, vector<8x8xbf16>, vector<8x8xf32> -> vector<8x8xf32>
    %c0_46 = arith.constant 0 : index
    %c24 = arith.constant 24 : index
    %109 = vector.load %arg12[%c0_46, %c24] : memref<8x32xf32, #tpu.memory_space<vmem>>, vector<8x8xf32>
    tpu.vector_store %arg12[%c0_46, %c24], %108 {strides = array<i32>} : memref<8x32xf32, #tpu.memory_space<vmem>>, vector<8x8xf32>,
    %c0_47 = arith.constant 0 : index
    %c0_48 = arith.constant 0 : index
    %110 = vector.load %arg12[%c0_47, %c0_48] : memref<8x32xf32, #tpu.memory_space<vmem>>, vector<8x32xf32>
    %111 = arith.truncf %110 : vector<8x32xf32> to vector<8x32xbf16>
    %c0_49 = arith.constant 0 : index
    %c0_50 = arith.constant 0 : index
    %112 = vector.load %arg5[%c0_49, %c0_50] : memref<32x32xbf16, #tpu.memory_space<vmem>>, vector<32x32xbf16>
    %cst_51 = arith.constant dense<0.000000e+00> : vector<8x32xf32>
    %113 = tpu.matmul %111, %112, %cst_51 {dimension_numbers = #tpu.dot_dimension_numbers<[1], [0], [0], [1], [0, 0, 1, 1], [], []>} : vector<8x32xbf16>, vector<32x32xbf16>, vector<8x32xf32> -> vector<8x32xf32>
    %114 = vector.extract_strided_slice %0 {offsets = [5, 0], sizes = [1, 32], strides = [1, 1]} : vector<8x32xf32> to vector<1x32xf32>
    %115 = vector.broadcast %114 : vector<1x32xf32> to vector<8x32xf32>
    %116 = arith.addf %113, %115 : vector<8x32xf32>
    %c0_52 = arith.constant 0 : index
    %117 = arith.index_cast %5 : i32 to index
    %c0_53 = arith.constant 0 : index
    %118 = vector.load %arg2[%c0_52, %117, %c0_53] : memref<1x8x32xf32, #tpu.memory_space<vmem>>, vector<1x8x32xf32>
    %119 = vector.shape_cast %118 : vector<1x8x32xf32> to vector<8x32xf32>
    %120 = arith.addf %119, %116 : vector<8x32xf32>
    %c0_54 = arith.constant 0 : index
    %c0_55 = arith.constant 0 : index
    %c0_56 = arith.constant 0 : index
    %121 = vector.load %arg7[%c0_54, %c0_55, %c0_56] : memref<1x8x32xf32, #tpu.memory_space<vmem>>, vector<1x8x32xf32>
    %122 = vector.shape_cast %121 : vector<1x8x32xf32> to vector<8x32xf32>
    %123 = vector.shape_cast %120 : vector<8x32xf32> to vector<1x8x32xf32>
    tpu.vector_store %arg7[%c0_54, %c0_55, %c0_56], %123 {strides = array<i32>} : memref<1x8x32xf32, #tpu.memory_space<vmem>>, vector<1x8x32xf32>,
    return
  }
  func.func @transform_0(%arg0: i32, %arg1: i32) -> (i32, i32, i32) {
    %c0_i32 = arith.constant 0 : i32
    %c0_i32_0 = arith.constant 0 : i32
    %c0_i32_1 = arith.constant 0 : i32
    return %arg0, %c0_i32, %c0_i32_0 : i32, i32, i32
  }
  func.func @transform_1(%arg0: i32, %arg1: i32) -> (i32, i32, i32) {
    %c0_i32 = arith.constant 0 : i32
    %c0_i32_0 = arith.constant 0 : i32
    %c0_i32_1 = arith.constant 0 : i32
    return %arg0, %c0_i32, %c0_i32_0 : i32, i32, i32
  }
  func.func @transform_2(%arg0: i32, %arg1: i32) -> (i32, i32) {
    %c0_i32 = arith.constant 0 : i32
    %c0_i32_0 = arith.constant 0 : i32
    %c0_i32_1 = arith.constant 0 : i32
    return %c0_i32, %c0_i32_0 : i32, i32
  }
  func.func @transform_3(%arg0: i32, %arg1: i32) -> (i32, i32) {
    %c0_i32 = arith.constant 0 : i32
    %c0_i32_0 = arith.constant 0 : i32
    %c0_i32_1 = arith.constant 0 : i32
    return %c0_i32, %c0_i32_0 : i32, i32
  }
  func.func @transform_4(%arg0: i32, %arg1: i32) -> (i32, i32) {
    %c0_i32 = arith.constant 0 : i32
    %c0_i32_0 = arith.constant 0 : i32
    %c0_i32_1 = arith.constant 0 : i32
    return %c0_i32, %c0_i32_0 : i32, i32
  }
  func.func @transform_5(%arg0: i32, %arg1: i32) -> (i32, i32, i32) {
    %c0_i32 = arith.constant 0 : i32
    %c0_i32_0 = arith.constant 0 : i32
    return %arg0, %arg1, %c0_i32 : i32, i32, i32
  }
  func.func @transform_6(%arg0: i32, %arg1: i32) -> (i32, i32, i32, i32) {
    %c0_i32 = arith.constant 0 : i32
    %c0_i32_0 = arith.constant 0 : i32
    %c0_i32_1 = arith.constant 0 : i32
    return %arg0, %c0_i32, %arg1, %c0_i32_0 : i32, i32, i32, i32
  }
}

</mosaic_0001>

<llo_original>
// kernel: encoder_layer_forward.3
$region0: #{encoder_layer_forward.3}
  #allocation0 [shape = 'u32[]', space=smem, size = 0x4, offset = 0x4, fixed_abs, tag = 'smem constant byte address 0x4 - core index']
  #allocation1 [shape = 'u32[144,128]{1,0:T(1,128)}', space=vmem, size = 0x12000, scoped, tag = 'internal scratch']
  %s0 = inlined_call_operand.hbm [shape: f32[16,32], index: 0, kind: input, shape index: {}]
  %s1 = inlined_call_operand.hbm [shape: f32[8,32], index: 1, kind: input, shape index: {}]
  %s2 = inlined_call_operand.hbm [shape: bf16[32,64], index: 2, kind: input, shape index: {}]
  %s3 = inlined_call_operand.hbm [shape: f32[1,64], index: 3, kind: input, shape index: {}]
  %s4 = inlined_call_operand.hbm [shape: bf16[64,32], index: 4, kind: input, shape index: {}]
  %s5 = inlined_call_operand.hbm [shape: f32[16,32], index: 5, kind: output, shape index: {}]
  %s6 = sld [smem:[#allocation0]]
  $region50: #{encoder_layer_forward.3} parent=0
    _
  %s8 = ssub.s32 1, %s6
  %s9 = scalar_select 0, %s8, %s6
  $region1: #{encoder_layer_forward.3} parent=0
    #allocation2 [shape = 'u8[8192]{0}', space=vmem, size = 0x2000, scoped, tag = 'input window, operand 0, single buffered']
    #allocation3 [shape = 's32[1]{0}', space=sflag, size = 0x4, scoped, tag = 'scoped memory for encoder_layer_forward.3']
    #allocation4 [shape = 's32[1]{0}', space=sflag, size = 0x4, scoped, tag = 'scoped memory for encoder_layer_forward.3']
    #allocation5 [shape = 'u8[4096]{0}', space=vmem, size = 0x1000, scoped, tag = 'input window, operand 1, single buffered']
    #allocation6 [shape = 's32[1]{0}', space=sflag, size = 0x4, scoped, tag = 'scoped memory for encoder_layer_forward.3']
    #allocation7 [shape = 'u8[8192]{0}', space=vmem, size = 0x2000, scoped, tag = 'input window, operand 2, single buffered']
    #allocation8 [shape = 'u8[512]{0}', space=vmem, size = 0x400, scoped, tag = 'input window, operand 3, single buffered']
    #allocation9 [shape = 's32[1]{0}', space=sflag, size = 0x4, scoped, tag = 'scoped memory for encoder_layer_forward.3']
    #allocation10 [shape = 'u8[16384]{0}', space=vmem, size = 0x4000, scoped, tag = 'input window, operand 4, single buffered']
    #allocation11 [shape = 'u8[8192]{0}', space=vmem, size = 0x2000, scoped, tag = 'output window, operand 0, single buffered']
    %10 = vsyncpa [#allocation3], 0
    %11 = vsyncpa [#allocation6], 0
    %12 = vsyncpa [#allocation9], 0
    %13 = vsyncpa [#allocation4], 0
    // Predicated region
    $region2: #{encoder_layer_forward.3} parent=1 // pred_check
      _
    $region3: #{encoder_layer_forward.3} parent=1 // pred_check_branch
      %15 = sbr.rel (0) target = $region5
    $region4: #{encoder_layer_forward.3} parent=1 // pred_region
      %s17 = ssub.s32 256, 256
      %18 = vsyncadd [#allocation3], %s17
      %s19 = sshll.u32 [#allocation2], 4
      %s20 = int_to_ptr.vmem [resolvable:$true] %s19
      %25 = dma.hbm_to_vmem [thread:$0]  %s0, 256, %s20, [#allocation3], 128, 128, 8
    $region5: #{encoder_layer_forward.3} parent=1 // pred_fallthru
      _
    // Predicated region
    $region6: #{encoder_layer_forward.3} parent=1 // pred_check
      _
    $region7: #{encoder_layer_forward.3} parent=1 // pred_check_branch
      %27 = sbr.rel (0) target = $region9
    $region8: #{encoder_layer_forward.3} parent=1 // pred_region
      %s29 = ssub.s32 128, 128
      %30 = vsyncadd [#allocation6], %s29
      %s32 = sshll.u32 [#allocation5], 4
      %s33 = int_to_ptr.vmem [resolvable:$true] %s32
      %35 = dma.hbm_to_vmem [thread:$0]  %s1, 128, %s33, [#allocation6]
    $region9: #{encoder_layer_forward.3} parent=1 // pred_fallthru
      _
    // Predicated region
    $region10: #{encoder_layer_forward.3} parent=1 // pred_check
      _
    $region11: #{encoder_layer_forward.3} parent=1 // pred_check_branch
      %37 = sbr.rel (0) target = $region13
    $region12: #{encoder_layer_forward.3} parent=1 // pred_region
      %s39 = ssub.s32 256, 256
      %40 = vsyncadd [#allocation6], %s39
      %s41 = sshll.u32 [#allocation7], 4
      %s42 = int_to_ptr.vmem [resolvable:$true] %s41
      %47 = dma.hbm_to_vmem [thread:$0]  %s2, 256, %s42, [#allocation6], 64, 64, 4
    $region13: #{encoder_layer_forward.3} parent=1 // pred_fallthru
      _
    // Predicated region
    $region14: #{encoder_layer_forward.3} parent=1 // pred_check
      _
    $region15: #{encoder_layer_forward.3} parent=1 // pred_check_branch
      %49 = sbr.rel (0) target = $region17
    $region16: #{encoder_layer_forward.3} parent=1 // pred_region
      %s51 = ssub.s32 16, 16
      %52 = vsyncadd [#allocation9], %s51
      %s54 = sshll.u32 [#allocation8], 4
      %s55 = int_to_ptr.vmem [resolvable:$true] %s54
      %57 = dma.hbm_to_vmem [thread:$0]  %s3, 16, %s55, [#allocation9]
    $region17: #{encoder_layer_forward.3} parent=1 // pred_fallthru
      _
    // Predicated region
    $region18: #{encoder_layer_forward.3} parent=1 // pred_check
      _
    $region19: #{encoder_layer_forward.3} parent=1 // pred_check_branch
      %59 = sbr.rel (0) target = $region21
    $region20: #{encoder_layer_forward.3} parent=1 // pred_region
      %s61 = ssub.s32 512, 512
      %62 = vsyncadd [#allocation9], %s61
      %s63 = sshll.u32 [#allocation10], 4
      %s64 = int_to_ptr.vmem [resolvable:$true] %s63
      %69 = dma.hbm_to_vmem [thread:$0]  %s4, 512, %s64, [#allocation9], 64, 64, 4
    $region21: #{encoder_layer_forward.3} parent=1 // pred_fallthru
      _
    // Predicated region
    $region22: #{encoder_layer_forward.3} parent=1 // pred_check
      _
    $region23: #{encoder_layer_forward.3} parent=1 // pred_check_branch
      %71 = sbr.rel (0) target = $region25
    $region24: #{encoder_layer_forward.3} parent=1 // pred_region
      %72 = dma.done [#allocation3], 256
    $region25: #{encoder_layer_forward.3} parent=1 // pred_fallthru
      _
    // Predicated region
    $region26: #{encoder_layer_forward.3} parent=1 // pred_check
      _
    $region27: #{encoder_layer_forward.3} parent=1 // pred_check_branch
      %74 = sbr.rel (0) target = $region29
    $region28: #{encoder_layer_forward.3} parent=1 // pred_region
      %75 = dma.done [#allocation6], 128
    $region29: #{encoder_layer_forward.3} parent=1 // pred_fallthru
      _
    // Predicated region
    $region30: #{encoder_layer_forward.3} parent=1 // pred_check
      _
    $region31: #{encoder_layer_forward.3} parent=1 // pred_check_branch
      %77 = sbr.rel (0) target = $region33
    $region32: #{encoder_layer_forward.3} parent=1 // pred_region
      %78 = dma.done [#allocation6], 256
    $region33: #{encoder_layer_forward.3} parent=1 // pred_fallthru
      _
    // Predicated region
    $region34: #{encoder_layer_forward.3} parent=1 // pred_check
      _
    $region35: #{encoder_layer_forward.3} parent=1 // pred_check_branch
      %80 = sbr.rel (0) target = $region37
    $region36: #{encoder_layer_forward.3} parent=1 // pred_region
      %81 = dma.done [#allocation9], 16
    $region37: #{encoder_layer_forward.3} parent=1 // pred_fallthru
      _
    // Predicated region
    $region38: #{encoder_layer_forward.3} parent=1 // pred_check
      _
    $region39: #{encoder_layer_forward.3} parent=1 // pred_check_branch
      %83 = sbr.rel (0) target = $region41
    $region40: #{encoder_layer_forward.3} parent=1 // pred_region
      %84 = dma.done [#allocation9], 512
    $region41: #{encoder_layer_forward.3} parent=1 // pred_fallthru
      _
    %v86 = vld [vmem:[#allocation2] sm:$0xff]
    %v87 = vld [vmem:[#allocation2 + $0x8] sm:$0xff]
    %v88 = vld [vmem:[#allocation5] sm:$0xff]
    %vm89 = vcmask 261120
    %v90 = vsel %vm89, %v86, 0.0
    %91 = vadd.xlane.f32.xlu0 %v90
    %v92 = vpop.xlane.xlu0 %91
    %v93 = vsel %vm89, %v87, 0.0
    %94 = vadd.xlane.f32.xlu0 %v93
    %v95 = vpop.xlane.xlu0 %94
    %v96 = vrcp.pop 32.0
    %v97 = vmul.f32 %v92, %v96
    %v98 = vmul.f32 %v95, %v96
    %v99 = vsub.f32 %v86, %v97
    %v100 = vsub.f32 %v87, %v98
    %v101 = vmul.f32 %v99, %v99
    %v102 = vmul.f32 %v100, %v100
    %v103 = vsel %vm89, %v101, 0.0
    %104 = vadd.xlane.f32.xlu0 %v103
    %v105 = vpop.xlane.xlu0 %104
    %v106 = vsel %vm89, %v102, 0.0
    %107 = vadd.xlane.f32.xlu0 %v106
    %v108 = vpop.xlane.xlu0 %107
    %v109 = vmul.f32 %v105, 0.032258064
    %v110 = vmul.f32 %v108, 0.032258064
    %v111 = vrsqrt.pop %v109
    %v112 = vmul.f32 %v109, %v111
    %vm113 = vcmp.eq.f32.partialorder %v109, inf
    %v114 = vsel %vm113, %v109, %v112
    %vm115 = vcmp.eq.f32.partialorder %v109, 0.0
    %v116 = vand.u32 %v109, 2147483648
    %v117 = vsel %vm115, %v116, %v114
    %v118 = vrsqrt.pop %v110
    %v119 = vmul.f32 %v110, %v118
    %vm120 = vcmp.eq.f32.partialorder %v110, inf
    %v121 = vsel %vm120, %v110, %v119
    %vm122 = vcmp.eq.f32.partialorder %v110, 0.0
    %v123 = vand.u32 %v110, 2147483648
    %v124 = vsel %vm122, %v123, %v121
    %v125 = vadd.f32 %v117, 1e-06
    %v126 = vadd.f32 %v124, 1e-06
    %v127 = vrcp.pop %v125
    %v128 = vrcp.pop %v126
    %v129 = vmul.f32 %v99, %v127
    %v130 = vmul.f32 %v100, %v128
    %v131 = vlaneseq
    %v132 = vshrl.u32 %v131, 7
    %v133 = vsub.s32 0, %v132
    %v134 = vrot.slane %v88, %v133
    %v135 = vmul.f32 %v134, %v129
    %v136 = vmul.f32 %v134, %v130
    %v137 = vlaneseq
    %v138 = vshrl.u32 %v137, 7
    %v139 = vsub.s32 1, %v138
    %v140 = vrot.slane %v88, %v139
    %v141 = vadd.f32 %v135, %v140
    %v142 = vadd.f32 %v136, %v140
    %v143 = vpack.c.bf16 %v142, %v141
    %v144 = vld [vmem:[#allocation7] sm:$0xf]
    %v145 = vld [vmem:[#allocation7 + $0x4] sm:$0xf]
    %v146 = vld [vmem:[#allocation7 + $0x8] sm:$0xf]
    %v147 = vld [vmem:[#allocation7 + $0xc] sm:$0xf]
    %v148 = vld [vmem:[#allocation8] sm:$0x1]
    %v150 = vlaneseq
    %v151 = vshrl.u32 %v150, 7
    %v152 = vsub.s32 0, %v151
    %v153 = vrot.slane %v148, %v152
    %v159 = vunpack.c.l.b16 %v144
    %v160 = vunpack.c.l.b16 %v145
    %v161 = vunpack.c.l.b16 %v146
    %v162 = vunpack.c.l.b16 %v147
    %v163 = vpack.c.b16 %v160, %v159
    %v164 = vpack.c.b16 %v162, %v161
    %v168 = vsel %vm89, %v143, 0
    %170 = vmatprep.subr.bf16.mxu0 0
    %171 = vmatpush1.bf16.msra.mxu0 %v163
    %172 = vmatprep.subr.bf16.mxu0 0
    %173 = vmatpush1.bf16.msra.mxu0 %v164
    %174 = vmatprep.subr.bf16.mxu0 0
    %175 = vmatpush1.bf16.msra.mxu0 0
    %176 = vmatprep.subr.bf16.mxu0 0
    %177 = vmatpush1.bf16.msra.mxu0 0
    %178 = vmatprep.subr.bf16.mxu0 0
    %179 = vmatpush1.bf16.msra.mxu0 0
    %180 = vmatprep.subr.bf16.mxu0 0
    %181 = vmatpush1.bf16.msra.mxu0 0
    %182 = vmatprep.subr.bf16.mxu0 0
    %183 = vmatpush1.bf16.msra.mxu0 0
    %184 = vmatprep.subr.bf16.mxu0 0
    %185 = vmatpush1.bf16.msra.mxu0 0
    %186 = vmatprep.subr.bf16.mxu0 0
    %187 = vmatpush1.bf16.msra.mxu0 0
    %188 = vmatprep.subr.bf16.mxu0 0
    %189 = vmatpush1.bf16.msra.mxu0 0
    %190 = vmatprep.subr.bf16.mxu0 0
    %191 = vmatpush1.bf16.msra.mxu0 0
    %192 = vmatprep.subr.bf16.mxu0 0
    %193 = vmatpush1.bf16.msra.mxu0 0
    %194 = vmatprep.subr.bf16.mxu0 0
    %195 = vmatpush1.bf16.msra.mxu0 0
    %196 = vmatprep.subr.bf16.mxu0 0
    %197 = vmatpush1.bf16.msra.mxu0 0
    %198 = vmatprep.subr.bf16.mxu0 0
    %199 = vmatpush1.bf16.msra.mxu0 0
    %200 = vmatprep.subr.bf16.mxu0 0
    %201 = vmatpush1.bf16.msra.mxu0 0
    %202 = vmatprep.mubr.bf16.mxu0 0
    %203 = vmatmul.mubr.bf16.gmra.mrb[0].mxu0 %v168
    %v204 = vpop.f32.mrb[0].mxu0
    %v205 = vadd.f32 %v153, %v204
    %v206 = vpop.f32.mrb[0].mxu0
    %v207 = vpop.f32.mrb[0].mxu0
    %v208 = vadd.f32 %v153, %v207
    %v209 = vpop.f32.mrb[0].mxu0
    %210 = vdwg.mxu0
    %v211 = vmax.f32 %v205, 0.0
    %v212 = vmax.f32 %v208, 0.0
    %v213 = vpack.c.bf16 %v212, %v211
    %v214 = vld [vmem:[#allocation10] sm:$0xf]
    %v215 = vld [vmem:[#allocation10 + $0x4] sm:$0xf]
    %v216 = vld [vmem:[#allocation10 + $0x8] sm:$0xf]
    %v217 = vld [vmem:[#allocation10 + $0xc] sm:$0xf]
    %v218 = vld [vmem:[#allocation10 + $0x10] sm:$0xf]
    %v219 = vld [vmem:[#allocation10 + $0x14] sm:$0xf]
    %v220 = vld [vmem:[#allocation10 + $0x18] sm:$0xf]
    %v221 = vld [vmem:[#allocation10 + $0x1c] sm:$0xf]
    %v222 = vlaneseq
    %v223 = vshrl.u32 %v222, 7
    %v224 = vsub.s32 2, %v223
    %v225 = vrot.slane %v88, %v224
    %v234 = vunpack.c.l.b16 %v214
    %v235 = vunpack.c.l.b16 %v215
    %v236 = vunpack.c.l.b16 %v216
    %v237 = vunpack.c.l.b16 %v217
    %v238 = vunpack.c.l.b16 %v218
    %v239 = vunpack.c.l.b16 %v219
    %v240 = vunpack.c.l.b16 %v220
    %v241 = vunpack.c.l.b16 %v221
    %v242 = vpack.c.b16 %v235, %v234
    %v243 = vpack.c.b16 %v237, %v236
    %v244 = vpack.c.b16 %v239, %v238
    %v245 = vpack.c.b16 %v241, %v240
    %vm250 = vcmask 523264
    %v252 = vsel %vm250, %v213, 0
    %254 = vmatprep.subr.bf16.mxu0 0
    %255 = vmatpush1.bf16.msra.mxu0 %v242
    %256 = vmatprep.subr.bf16.mxu0 0
    %257 = vmatpush1.bf16.msra.mxu0 %v243
    %258 = vmatprep.subr.bf16.mxu0 0
    %259 = vmatpush1.bf16.msra.mxu0 %v244
    %260 = vmatprep.subr.bf16.mxu0 0
    %261 = vmatpush1.bf16.msra.mxu0 %v245
    %262 = vmatprep.subr.bf16.mxu0 0
    %263 = vmatpush1.bf16.msra.mxu0 0
    %264 = vmatprep.subr.bf16.mxu0 0
    %265 = vmatpush1.bf16.msra.mxu0 0
    %266 = vmatprep.subr.bf16.mxu0 0
    %267 = vmatpush1.bf16.msra.mxu0 0
    %268 = vmatprep.subr.bf16.mxu0 0
    %269 = vmatpush1.bf16.msra.mxu0 0
    %270 = vmatprep.subr.bf16.mxu0 0
    %271 = vmatpush1.bf16.msra.mxu0 0
    %272 = vmatprep.subr.bf16.mxu0 0
    %273 = vmatpush1.bf16.msra.mxu0 0
    %274 = vmatprep.subr.bf16.mxu0 0
    %275 = vmatpush1.bf16.msra.mxu0 0
    %276 = vmatprep.subr.bf16.mxu0 0
    %277 = vmatpush1.bf16.msra.mxu0 0
    %278 = vmatprep.subr.bf16.mxu0 0
    %279 = vmatpush1.bf16.msra.mxu0 0
    %280 = vmatprep.subr.bf16.mxu0 0
    %281 = vmatpush1.bf16.msra.mxu0 0
    %282 = vmatprep.subr.bf16.mxu0 0
    %283 = vmatpush1.bf16.msra.mxu0 0
    %284 = vmatprep.subr.bf16.mxu0 0
    %285 = vmatpush1.bf16.msra.mxu0 0
    %286 = vmatprep.mubr.bf16.mxu0 0
    %287 = vmatmul.mubr.bf16.gmra.mrb[0].mxu0 %v252
    %v288 = vpop.f32.mrb[0].mxu0
    %v289 = vadd.f32 %v225, %v288
    %v290 = vpop.f32.mrb[0].mxu0
    %v291 = vpop.f32.mrb[0].mxu0
    %v292 = vadd.f32 %v225, %v291
    %v293 = vpop.f32.mrb[0].mxu0
    %294 = vdwg.mxu0
    %v295 = vadd.f32 %v86, %v289
    %v296 = vadd.f32 %v87, %v292
    %297 = vst.msk [vmem:[#allocation11] sm:$0xff] %vm89, %v295
    %298 = vst.msk [vmem:[#allocation11 + $0x8] sm:$0xff] %vm89, %v296
    // Predicated region
    $region42: #{encoder_layer_forward.3} parent=1 // pred_check
      _
    $region43: #{encoder_layer_forward.3} parent=1 // pred_check_branch
      %300 = sbr.rel (0) target = $region45
    $region44: #{encoder_layer_forward.3} parent=1 // pred_region
      %s302 = ssub.s32 256, 256
      %303 = vsyncadd [#allocation4], %s302
      %s304 = sshll.u32 [#allocation11], 4
      %s305 = int_to_ptr.vmem [resolvable:$true] %s304
      %310 = dma.vmem_to_hbm [thread:$0]  %s305, 256, %s5, [#allocation4], 128, 128, 8
    $region45: #{encoder_layer_forward.3} parent=1 // pred_fallthru
      _
    // Predicated region
    $region46: #{encoder_layer_forward.3} parent=1 // pred_check
      _
    $region47: #{encoder_layer_forward.3} parent=1 // pred_check_branch
      %312 = sbr.rel (0) target = $region49
    $region48: #{encoder_layer_forward.3} parent=1 // pred_region
      %313 = dma.done [#allocation4], 256
    $region49: #{encoder_layer_forward.3} parent=1 // pred_fallthru
      _
    %314 = vsyncpa [#allocation3], 1
    %315 = vsyncpa [#allocation6], 1
    %316 = vsyncpa [#allocation9], 1
    %317 = vsyncpa [#allocation4], 1

// kernel: encoder_layer_forward.2
$region0: #{encoder_layer_forward.2}
  #allocation0 [shape = 'u32[]', space=smem, size = 0x4, offset = 0x4, fixed_abs, tag = 'smem constant byte address 0x4 - core index']
  #allocation1 [shape = 'u32[144,128]{1,0:T(1,128)}', space=vmem, size = 0x12000, scoped, tag = 'internal scratch']
  #allocation2 [shape = 'f32[8,32]{1,0:T(8,128)}', space=vmem, size = 0x1000, scoped, tag = 'scratch operand']
  #allocation3 [shape = 'bf16[8,32]{1,0:T(8,128)(2,1)}', space=vmem, size = 0x800, scoped, tag = 'scratch operand']
  #allocation4 [shape = 'bf16[8,32]{1,0:T(8,128)(2,1)}', space=vmem, size = 0x800, scoped, tag = 'scratch operand']
  #allocation5 [shape = 'f32[8,32]{1,0:T(8,128)}', space=vmem, size = 0x1000, scoped, tag = 'scratch operand']
  %s0 = inlined_call_operand.hbm [shape: f32[2,8,32], index: 0, kind: input, shape index: {}]
  %s1 = inlined_call_operand.hbm [shape: bf16[2,1,8], index: 1, kind: input, shape index: {}]
  %s2 = inlined_call_operand.hbm [shape: bf16[32,96], index: 2, kind: input, shape index: {}]
  %s3 = inlined_call_operand.hbm [shape: bf16[32,32], index: 3, kind: input, shape index: {}]
  %s4 = inlined_call_operand.hbm [shape: f32[8,32], index: 4, kind: input, shape index: {}]
  %s5 = inlined_call_operand.hbm [shape: f32[2,8,32], index: 5, kind: output, shape index: {0}]
  %s6 = inlined_call_operand.hbm [shape: f32[2,4,8,8], index: 6, kind: output, shape index: {1}]
  %7 = xla_tuple %s5, %s6
  %s8 = sld [smem:[#allocation0]]
  $region85: #{encoder_layer_forward.2} parent=0
    _
  %s10 = ssub.s32 1, %s8
  %s11 = scalar_select 0, %s10, %s8
  $region1: #{encoder_layer_forward.2} parent=0
    #allocation6 [shape = 'u8[8192]{0}', space=vmem, size = 0x2000, scoped, tag = 'input window, operand 0']
    #allocation7 [shape = 's32[2]{0}', space=sflag, size = 0x8, scoped, tag = 'scoped memory for encoder_layer_forward.2']
    #allocation8 [shape = 's32[2]{0}', space=sflag, size = 0x8, scoped, tag = 'scoped memory for encoder_layer_forward.2']
    #allocation9 [shape = 'u8[1024]{0}', space=vmem, size = 0x400, scoped, tag = 'input window, operand 1']
    #allocation10 [shape = 's32[2]{0}', space=sflag, size = 0x8, scoped, tag = 'scoped memory for encoder_layer_forward.2']
    #allocation11 [shape = 'u8[8192]{0}', space=vmem, size = 0x2000, scoped, tag = 'input window, operand 2, single buffered']
    #allocation12 [shape = 'u8[8192]{0}', space=vmem, size = 0x2000, scoped, tag = 'input window, operand 3, single buffered']
    #allocation13 [shape = 's32[1]{0}', space=sflag, size = 0x4, scoped, tag = 'scoped memory for encoder_layer_forward.2']
    #allocation14 [shape = 'u8[4096]{0}', space=vmem, size = 0x1000, scoped, tag = 'input window, operand 4, single buffered']
    #allocation15 [shape = 'u8[8192]{0}', space=vmem, size = 0x2000, scoped, tag = 'output window, operand 0']
    #allocation16 [shape = 'u8[32768]{0}', space=vmem, size = 0x8000, scoped, tag = 'output window, operand 1']
    #allocation17 [shape = 's32[2]{0}', space=sflag, size = 0x8, scoped, tag = 'scoped memory for encoder_layer_forward.2']
    %12 = vsyncpa [#allocation7], 0
    %s13 = scalar_lea.sflag [#allocation7], 1
    %14 = vsyncpa %s13, 0
    %15 = vsyncpa [#allocation10], 0
    %s16 = scalar_lea.sflag [#allocation10], 1
    %17 = vsyncpa %s16, 0
    %18 = vsyncpa [#allocation13], 0
    %19 = vsyncpa [#allocation8], 0
    %s20 = scalar_lea.sflag [#allocation8], 1
    %21 = vsyncpa %s20, 0
    %22 = vsyncpa [#allocation17], 0
    %s23 = scalar_lea.sflag [#allocation17], 1
    %24 = vsyncpa %s23, 0
    loop: start=0, step=1, limit=4
    $region2: #{encoder_layer_forward.2} parent=1 // loop_pre_header
      _
    $region3: #{encoder_layer_forward.2} parent=1 // loop_header
      %s26 = sphi 0, %s30
      %p27 = scmp.ge.s32.totalorder %s26, 4
      %s33 = sphi 0, %s45
      %s34 = sphi 0, %s41
      %s35 = sphi 0, %s33
      %s36 = sphi 0, %s34
      %s37 = sphi 0, %s35
      %s38 = sphi 0, %s36
      %s48 = sphi 0, %s50
      %s51 = sphi 0, %s48
      %s52 = sphi 0, %s51
      %s68 = sphi 0, %s52
      %s74 = sphi 0, %s76
      %s77 = sphi 0, %s74
      %s78 = sphi 0, %s77
      %s94 = sphi 0, %s78
      %s98 = sphi 0, %s98
      %s100 = sphi 0, %s98
      %s101 = sphi 0, %s100
      %s115 = sphi 0, %s101
      %s119 = sphi 0, %s119
      %s121 = sphi 0, %s119
      %s122 = sphi 0, %s121
      %s136 = sphi 0, %s122
      %s140 = sphi 0, %s140
      %s142 = sphi 0, %s140
      %s143 = sphi 0, %s142
      %s157 = sphi 0, %s143
      %s165 = sphi 0, %s167
      %s168 = sphi 0, %s165
      %s169 = sphi 0, %s168
      %s185 = sphi 0, %s169
      %s193 = sphi 0, %s195
      %s196 = sphi 0, %s193
      %s197 = sphi 0, %s196
      %s213 = sphi 0, %s197
    $region4: #{encoder_layer_forward.2} parent=1 // loop_header_branch
      %29 = sbr.rel (%p27) target = $region8
    $region5: #{encoder_layer_forward.2} parent=1 // loop_body
      %s31 = ssub.s32 %s26, 1
      %s32 = ssub.s32 %s26, 2
      %s39 = sadd.s32 1, %s34
      %p40 = scmp.ge.s32.totalorder %s39, 1
      %s41 = scalar_select %p40, 0, %s39
      %s42 = sadd.s32 1, %s33
      %s43 = scalar_select %p40, %s42, %s33
      %p44 = scmp.ge.s32.totalorder %s43, 2
      %s45 = scalar_select %p44, 0, %s43
      %s46 = ssub.s32 %s33, %s45
      %p47 = scmp.eq.s32.totalorder %s46, 0
      %s49 = sadd.s32 %s48, 1
      %s50 = scalar_select %p47, %s48, %s49
      %p53 = pneg %p47
      %p54 = scmp.eq.s32.totalorder %s26, 1
      %p55 = por %p53, %p54
      %p56 = scmp.ne.s32.totalorder %s48, %s51
      %p57 = scmp.eq.s32.totalorder %s26, 0
      %p58 = por %p56, %p57
      %p59 = scmp.ne.s32.totalorder %s48, %s51
      %p60 = scmp.eq.s32.totalorder %s31, 1
      %p61 = por %p59, %p60
      %p62 = scmp.ne.s32.totalorder %s51, %s52
      %p63 = scmp.eq.s32.totalorder %s31, 0
      %p64 = por %p62, %p63
      %p65 = scmp.ne.s32.totalorder %s51, %s52
      %p66 = scmp.eq.s32.totalorder %s32, 1
      %p67 = por %p65, %p66
      %p69 = scmp.ne.s32.totalorder %s52, %s68
      %p70 = scmp.eq.s32.totalorder %s32, 0
      %p71 = por %p69, %p70
      %s72 = ssub.s32 %s33, %s45
      %p73 = scmp.eq.s32.totalorder %s72, 0
      %s75 = sadd.s32 %s74, 1
      %s76 = scalar_select %p73, %s74, %s75
      %p79 = pneg %p73
      %p80 = scmp.eq.s32.totalorder %s26, 1
      %p81 = por %p79, %p80
      %p82 = scmp.ne.s32.totalorder %s74, %s77
      %p83 = scmp.eq.s32.totalorder %s26, 0
      %p84 = por %p82, %p83
      %p85 = scmp.ne.s32.totalorder %s74, %s77
      %p86 = scmp.eq.s32.totalorder %s31, 1
      %p87 = por %p85, %p86
      %p88 = scmp.ne.s32.totalorder %s77, %s78
      %p89 = scmp.eq.s32.totalorder %s31, 0
      %p90 = por %p88, %p89
      %p91 = scmp.ne.s32.totalorder %s77, %s78
      %p92 = scmp.eq.s32.totalorder %s32, 1
      %p93 = por %p91, %p92
      %p95 = scmp.ne.s32.totalorder %s78, %s94
      %p96 = scmp.eq.s32.totalorder %s32, 0
      %p97 = por %p95, %p96
      %s99 = sadd.s32 %s98, 1
      %p102 = scmp.eq.s32.totalorder %s26, 1
      %p103 = scmp.ne.s32.totalorder %s98, %s100
      %p104 = scmp.eq.s32.totalorder %s26, 0
      %p105 = por %p103, %p104
      %p106 = scmp.ne.s32.totalorder %s98, %s100
      %p107 = scmp.eq.s32.totalorder %s31, 1
      %p108 = por %p106, %p107
      %p109 = scmp.ne.s32.totalorder %s100, %s101
      %p110 = scmp.eq.s32.totalorder %s31, 0
      %p111 = por %p109, %p110
      %p112 = scmp.ne.s32.totalorder %s100, %s101
      %p113 = scmp.eq.s32.totalorder %s32, 1
      %p114 = por %p112, %p113
      %p116 = scmp.ne.s32.totalorder %s101, %s115
      %p117 = scmp.eq.s32.totalorder %s32, 0
      %p118 = por %p116, %p117
      %s120 = sadd.s32 %s119, 1
      %p123 = scmp.eq.s32.totalorder %s26, 1
      %p124 = scmp.ne.s32.totalorder %s119, %s121
      %p125 = scmp.eq.s32.totalorder %s26, 0
      %p126 = por %p124, %p125
      %p127 = scmp.ne.s32.totalorder %s119, %s121
      %p128 = scmp.eq.s32.totalorder %s31, 1
      %p129 = por %p127, %p128
      %p130 = scmp.ne.s32.totalorder %s121, %s122
      %p131 = scmp.eq.s32.totalorder %s31, 0
      %p132 = por %p130, %p131
      %p133 = scmp.ne.s32.totalorder %s121, %s122
      %p134 = scmp.eq.s32.totalorder %s32, 1
      %p135 = por %p133, %p134
      %p137 = scmp.ne.s32.totalorder %s122, %s136
      %p138 = scmp.eq.s32.totalorder %s32, 0
      %p139 = por %p137, %p138
      %s141 = sadd.s32 %s140, 1
      %p144 = scmp.eq.s32.totalorder %s26, 1
      %p145 = scmp.ne.s32.totalorder %s140, %s142
      %p146 = scmp.eq.s32.totalorder %s26, 0
      %p147 = por %p145, %p146
      %p148 = scmp.ne.s32.totalorder %s140, %s142
      %p149 = scmp.eq.s32.totalorder %s31, 1
      %p150 = por %p148, %p149
      %p151 = scmp.ne.s32.totalorder %s142, %s143
      %p152 = scmp.eq.s32.totalorder %s31, 0
      %p153 = por %p151, %p152
      %p154 = scmp.ne.s32.totalorder %s142, %s143
      %p155 = scmp.eq.s32.totalorder %s32, 1
      %p156 = por %p154, %p155
      %p158 = scmp.ne.s32.totalorder %s143, %s157
      %p159 = scmp.eq.s32.totalorder %s32, 0
      %p160 = por %p158, %p159
      %s161 = ssub.s32 %s33, %s45
      %s162 = ssub.s32 %s34, %s41
      %s163 = sor.u32 %s161, %s162
      %p164 = scmp.eq.s32.totalorder %s163, 0
      %s166 = sadd.s32 %s165, 1
      %s167 = scalar_select %p164, %s165, %s166
      %p170 = pneg %p164
      %p171 = scmp.eq.s32.totalorder %s26, 1
      %p172 = por %p170, %p171
      %p173 = scmp.ne.s32.totalorder %s165, %s168
      %p174 = scmp.eq.s32.totalorder %s26, 0
      %p175 = por %p173, %p174
      %p176 = scmp.ne.s32.totalorder %s165, %s168
      %p177 = scmp.eq.s32.totalorder %s31, 1
      %p178 = por %p176, %p177
      %p179 = scmp.ne.s32.totalorder %s168, %s169
      %p180 = scmp.eq.s32.totalorder %s31, 0
      %p181 = por %p179, %p180
      %p182 = scmp.ne.s32.totalorder %s168, %s169
      %p183 = scmp.eq.s32.totalorder %s32, 1
      %p184 = por %p182, %p183
      %p186 = scmp.ne.s32.totalorder %s169, %s185
      %p187 = scmp.eq.s32.totalorder %s32, 0
      %p188 = por %p186, %p187
      %s189 = ssub.s32 %s33, %s45
      %s190 = ssub.s32 %s34, %s41
      %s191 = sor.u32 %s189, %s190
      %p192 = scmp.eq.s32.totalorder %s191, 0
      %s194 = sadd.s32 %s193, 1
      %s195 = scalar_select %p192, %s193, %s194
      %p198 = pneg %p192
      %p199 = scmp.eq.s32.totalorder %s26, 1
      %p200 = por %p198, %p199
      %p201 = scmp.ne.s32.totalorder %s193, %s196
      %p202 = scmp.eq.s32.totalorder %s26, 0
      %p203 = por %p201, %p202
      %p204 = scmp.ne.s32.totalorder %s193, %s196
      %p205 = scmp.eq.s32.totalorder %s31, 1
      %p206 = por %p204, %p205
      %p207 = scmp.ne.s32.totalorder %s196, %s197
      %p208 = scmp.eq.s32.totalorder %s31, 0
      %p209 = por %p207, %p208
      %p210 = scmp.ne.s32.totalorder %s196, %s197
      %p211 = scmp.eq.s32.totalorder %s32, 1
      %p212 = por %p210, %p211
      %p214 = scmp.ne.s32.totalorder %s197, %s213
      %p215 = scmp.eq.s32.totalorder %s32, 0
      %p216 = por %p214, %p215
      %p217 = scmp.le.s32.totalorder 1, %s26
      %p218 = scmp.lt.s32.totalorder %s26, 3
      %p219 = pnand %p217, %p218
      %p220 = pneg %p219
      // Predicated region
      $region9: #{encoder_layer_forward.2} parent=5 // pred_check
        _
      $region10: #{encoder_layer_forward.2} parent=5 // pred_check_branch
        %222 = sbr.rel (%p219) target = $region12
      $region11: #{encoder_layer_forward.2} parent=5 // pred_region
        %s223 = ssub.s32 %s26, 1
        // Predicated region
        $region13: #{encoder_layer_forward.2} parent=11 // pred_check
          %p224 = pneg %p111
        $region14: #{encoder_layer_forward.2} parent=11 // pred_check_branch
          %226 = sbr.rel (%p224) target = $region16
        $region15: #{encoder_layer_forward.2} parent=11 // pred_region
          %s228 = ssub.s32 256, 256
          %229 = vsyncadd [#allocation10], %s228
          %s230 = sshll.u32 [#allocation11], 4
          %s231 = int_to_ptr.vmem [resolvable:$true] %s230
          %236 = dma.hbm_to_vmem [thread:$0]  %s2, 256, %s231, [#allocation10], 64, 64, 4
        $region16: #{encoder_layer_forward.2} parent=11 // pred_fallthru
          _
        // Predicated region
        $region17: #{encoder_layer_forward.2} parent=11 // pred_check
          %p237 = pneg %p132
        $region18: #{encoder_layer_forward.2} parent=11 // pred_check_branch
          %239 = sbr.rel (%p237) target = $region20
        $region19: #{encoder_layer_forward.2} parent=11 // pred_region
          %s241 = ssub.s32 256, 256
          %242 = vsyncadd [#allocation13], %s241
          %s243 = sshll.u32 [#allocation12], 4
          %s244 = int_to_ptr.vmem [resolvable:$true] %s243
          %249 = dma.hbm_to_vmem [thread:$0]  %s3, 256, %s244, [#allocation13], 64, 64, 4
        $region20: #{encoder_layer_forward.2} parent=11 // pred_fallthru
          _
        // Predicated region
        $region21: #{encoder_layer_forward.2} parent=11 // pred_check
          %p250 = pneg %p153
        $region22: #{encoder_layer_forward.2} parent=11 // pred_check_branch
          %252 = sbr.rel (%p250) target = $region24
        $region23: #{encoder_layer_forward.2} parent=11 // pred_region
          %s254 = ssub.s32 128, 128
          %255 = vsyncadd [#allocation13], %s254
          %s257 = sshll.u32 [#allocation14], 4
          %s258 = int_to_ptr.vmem [resolvable:$true] %s257
          %260 = dma.hbm_to_vmem [thread:$0]  %s4, 128, %s258, [#allocation13]
        $region24: #{encoder_layer_forward.2} parent=11 // pred_fallthru
          _
      $region12: #{encoder_layer_forward.2} parent=5 // pred_fallthru
        _
      %p261 = scmp.lt.s32.totalorder %s26, 2
      // Predicated region
      $region25: #{encoder_layer_forward.2} parent=5 // pred_check
        %p262 = pneg %p261
      $region26: #{encoder_layer_forward.2} parent=5 // pred_check_branch
        %264 = sbr.rel (%p262) target = $region28
      $region27: #{encoder_layer_forward.2} parent=5 // pred_region
        // Predicated region
        $region29: #{encoder_layer_forward.2} parent=27 // pred_check
          %p265 = pneg %p58
        $region30: #{encoder_layer_forward.2} parent=27 // pred_check_branch
          %267 = sbr.rel (%p265) target = $region32
        $region31: #{encoder_layer_forward.2} parent=27 // pred_region
          %s268 = sand.u32 %s48, 1
          %s269 = scalar_lea.sflag [#allocation7], %s268
          %s270 = sand.u32 %s48, 1
          %s271 = smul.addr %s270, 8
          %s272 = scalar_lea.vmem [#allocation6], %s271
          %s274 = ssub.s32 128, 128
          %275 = vsyncadd %s269, %s274
          %s276 = smul.addr %s33, 128
          %s277 = scalar_lea.hbm %s0, %s276
          %s279 = sshll.u32 %s272, 4
          %s280 = int_to_ptr.vmem [resolvable:$true] %s279
          %282 = dma.hbm_to_vmem [thread:$0]  %s277, 128, %s280, %s269
        $region32: #{encoder_layer_forward.2} parent=27 // pred_fallthru
          _
        // Predicated region
        $region33: #{encoder_layer_forward.2} parent=27 // pred_check
          %p283 = pneg %p84
        $region34: #{encoder_layer_forward.2} parent=27 // pred_check_branch
          %285 = sbr.rel (%p283) target = $region36
        $region35: #{encoder_layer_forward.2} parent=27 // pred_region
          %s286 = sand.u32 %s26, 1
          %s287 = scalar_lea.sflag [#allocation10], %s286
          %s288 = sand.u32 %s74, 1
          %s289 = scalar_lea.vmem [#allocation9], %s288
          %s291 = ssub.s32 16, 16
          %292 = vsyncadd %s287, %s291
          %s293 = smul.addr %s33, 16
          %s294 = scalar_lea.hbm %s1, %s293
          %s296 = sshll.u32 %s289, 4
          %s297 = int_to_ptr.vmem [resolvable:$true] %s296
          %299 = dma.hbm_to_vmem [thread:$0]  %s294, 16, %s297, %s287
        $region36: #{encoder_layer_forward.2} parent=27 // pred_fallthru
          _
      $region28: #{encoder_layer_forward.2} parent=5 // pred_fallthru
        _
      %p300 = scmp.le.s32.totalorder 1, %s26
      %p301 = scmp.lt.s32.totalorder %s26, 3
      %p302 = pnand %p300, %p301
      %p303 = pneg %p302
      // Predicated region
      $region37: #{encoder_layer_forward.2} parent=5 // pred_check
        _
      $region38: #{encoder_layer_forward.2} parent=5 // pred_check_branch
        %305 = sbr.rel (%p302) target = $region40
      $region39: #{encoder_layer_forward.2} parent=5 // pred_region
        %s306 = ssub.s32 %s26, 1
        %s307 = sand.u32 %s51, 1
        %s308 = scalar_lea.sflag [#allocation7], %s307
        %s309 = sand.u32 %s51, 1
        %s310 = smul.addr %s309, 8
        %s311 = scalar_lea.vmem [#allocation6], %s310
        // Predicated region
        $region41: #{encoder_layer_forward.2} parent=39 // pred_check
          %p312 = pneg %p64
        $region42: #{encoder_layer_forward.2} parent=39 // pred_check_branch
          %314 = sbr.rel (%p312) target = $region44
        $region43: #{encoder_layer_forward.2} parent=39 // pred_region
          %315 = dma.done %s308, 128
        $region44: #{encoder_layer_forward.2} parent=39 // pred_fallthru
          _
        %s316 = sand.u32 %s31, 1
        %s317 = scalar_lea.sflag [#allocation10], %s316
        %s318 = sand.u32 %s77, 1
        %s319 = scalar_lea.vmem [#allocation9], %s318
        // Predicated region
        $region45: #{encoder_layer_forward.2} parent=39 // pred_check
          %p320 = pneg %p90
        $region46: #{encoder_layer_forward.2} parent=39 // pred_check_branch
          %322 = sbr.rel (%p320) target = $region48
        $region47: #{encoder_layer_forward.2} parent=39 // pred_region
          %323 = dma.done %s317, 16
        $region48: #{encoder_layer_forward.2} parent=39 // pred_fallthru
          _
        // Predicated region
        $region49: #{encoder_layer_forward.2} parent=39 // pred_check
          %p324 = pneg %p111
        $region50: #{encoder_layer_forward.2} parent=39 // pred_check_branch
          %326 = sbr.rel (%p324) target = $region52
        $region51: #{encoder_layer_forward.2} parent=39 // pred_region
          %327 = dma.done [#allocation10], 256
        $region52: #{encoder_layer_forward.2} parent=39 // pred_fallthru
          _
        // Predicated region
        $region53: #{encoder_layer_forward.2} parent=39 // pred_check
          %p328 = pneg %p132
        $region54: #{encoder_layer_forward.2} parent=39 // pred_check_branch
          %330 = sbr.rel (%p328) target = $region56
        $region55: #{encoder_layer_forward.2} parent=39 // pred_region
          %331 = dma.done [#allocation13], 256
        $region56: #{encoder_layer_forward.2} parent=39 // pred_fallthru
          _
        // Predicated region
        $region57: #{encoder_layer_forward.2} parent=39 // pred_check
          %p332 = pneg %p153
        $region58: #{encoder_layer_forward.2} parent=39 // pred_check_branch
          %334 = sbr.rel (%p332) target = $region60
        $region59: #{encoder_layer_forward.2} parent=39 // pred_region
          %335 = dma.done [#allocation13], 128
        $region60: #{encoder_layer_forward.2} parent=39 // pred_fallthru
          _
        %s336 = sand.u32 %s51, 1
        %s337 = scalar_lea.sflag [#allocation7], %s336
        %s338 = sand.u32 %s51, 1
        %s339 = smul.addr %s338, 8
        %s340 = scalar_lea.vmem [#allocation6], %s339
        %p341 = pneg %p64
        %p342 = pneg %p61
        %s343 = sand.u32 %s31, 1
        %s344 = scalar_lea.sflag [#allocation10], %s343
        %s345 = sand.u32 %s77, 1
        %s346 = scalar_lea.vmem [#allocation9], %s345
        %p347 = pneg %p90
        %p348 = pneg %p87
        %p349 = pneg %p111
        %p350 = pneg %p108
        %p351 = pneg %p132
        %p352 = pneg %p129
        %p353 = pneg %p153
        %p354 = pneg %p150
        %p355 = pneg %p181
        %p356 = pneg %p178
        %s357 = sand.u32 %s168, 1
        %s358 = scalar_lea.sflag [#allocation8], %s357
        %s359 = sand.u32 %s168, 1
        %s360 = smul.addr %s359, 8
        %s361 = scalar_lea.vmem [#allocation15], %s360
        %p362 = pneg %p209
        %p363 = pneg %p206
        %s364 = sand.u32 %s196, 1
        %s365 = scalar_lea.sflag [#allocation17], %s364
        %s366 = sand.u32 %s196, 1
        %s367 = smul.addr %s366, 32
        %s368 = scalar_lea.vmem [#allocation16], %s367
        %v370 = vld [vmem:[#allocation14] sm:$0xff]
        %p371 = scmp.eq.s32.totalorder %s36, 0
        // Predicated region
        $region61: #{encoder_layer_forward.2} parent=39 // pred_check
          %p372 = pneg %p371
        $region62: #{encoder_layer_forward.2} parent=39 // pred_check_branch
          %374 = sbr.rel (%p372) target = $region64
        $region63: #{encoder_layer_forward.2} parent=39 // pred_region
          %v375 = vld [vmem:[%s311] sm:$0xff]
          %vm376 = vcmask 261120
          %v377 = vsel %vm376, %v375, 0.0
          %378 = vadd.xlane.f32.xlu0 %v377
          %v379 = vpop.xlane.xlu0 %378
          %v380 = vrcp.pop 32.0
          %v381 = vmul.f32 %v379, %v380
          %v382 = vsub.f32 %v375, %v381
          %v383 = vmul.f32 %v382, %v382
          %v384 = vsel %vm376, %v383, 0.0
          %385 = vadd.xlane.f32.xlu0 %v384
          %v386 = vpop.xlane.xlu0 %385
          %v387 = vmul.f32 %v386, 0.032258064
          %v388 = vrsqrt.pop %v387
          %v389 = vmul.f32 %v387, %v388
          %vm390 = vcmp.eq.f32.partialorder %v387, inf
          %v391 = vsel %vm390, %v387, %v389
          %vm392 = vcmp.eq.f32.partialorder %v387, 0.0
          %v393 = vand.u32 %v387, 2147483648
          %v394 = vsel %vm392, %v393, %v391
          %v395 = vadd.f32 %v394, 1e-06
          %v396 = vrcp.pop %v395
          %v397 = vmul.f32 %v382, %v396
          %v398 = vlaneseq
          %v399 = vshrl.u32 %v398, 7
          %v400 = vsub.s32 0, %v399
          %v401 = vrot.slane %v370, %v400
          %v402 = vmul.f32 %v401, %v397
          %v403 = vlaneseq
          %v404 = vshrl.u32 %v403, 7
          %v405 = vsub.s32 1, %v404
          %v406 = vrot.slane %v370, %v405
          %v407 = vadd.f32 %v402, %v406
          %v408 = vpack.c.bf16 %v407, %v407
          %v409 = vld [vmem:[#allocation11] sm:$0xf]
          %v410 = vld [vmem:[#allocation11 + $0x4] sm:$0xf]
          %v411 = vld [vmem:[#allocation11 + $0x8] sm:$0xf]
          %v412 = vld [vmem:[#allocation11 + $0xc] sm:$0xf]
          %v417 = vunpack.c.l.b16 %v409
          %v418 = vunpack.c.l.b16 %v410
          %v419 = vunpack.c.l.b16 %v411
          %v420 = vunpack.c.l.b16 %v412
          %v421 = vpack.c.b16 %v418, %v417
          %v422 = vpack.c.b16 %v420, %v419
          %v426 = vsel %vm376, %v408, 0
          %428 = vmatprep.subr.bf16.mxu0 0
          %429 = vmatpush1.bf16.msra.mxu0 %v421
          %430 = vmatprep.subr.bf16.mxu0 0
          %431 = vmatpush1.bf16.msra.mxu0 %v422
          %432 = vmatprep.subr.bf16.mxu0 0
          %433 = vmatpush1.bf16.msra.mxu0 0
          %434 = vmatprep.subr.bf16.mxu0 0
          %435 = vmatpush1.bf16.msra.mxu0 0
          %436 = vmatprep.subr.bf16.mxu0 0
          %437 = vmatpush1.bf16.msra.mxu0 0
          %438 = vmatprep.subr.bf16.mxu0 0
          %439 = vmatpush1.bf16.msra.mxu0 0
          %440 = vmatprep.subr.bf16.mxu0 0
          %441 = vmatpush1.bf16.msra.mxu0 0
          %442 = vmatprep.subr.bf16.mxu0 0
          %443 = vmatpush1.bf16.msra.mxu0 0
          %444 = vmatprep.subr.bf16.mxu0 0
          %445 = vmatpush1.bf16.msra.mxu0 0
          %446 = vmatprep.subr.bf16.mxu0 0
          %447 = vmatpush1.bf16.msra.mxu0 0
          %448 = vmatprep.subr.bf16.mxu0 0
          %449 = vmatpush1.bf16.msra.mxu0 0
          %450 = vmatprep.subr.bf16.mxu0 0
          %451 = vmatpush1.bf16.msra.mxu0 0
          %452 = vmatprep.subr.bf16.mxu0 0
          %453 = vmatpush1.bf16.msra.mxu0 0
          %454 = vmatprep.subr.bf16.mxu0 0
          %455 = vmatpush1.bf16.msra.mxu0 0
          %456 = vmatprep.subr.bf16.mxu0 0
          %457 = vmatpush1.bf16.msra.mxu0 0
          %458 = vmatprep.subr.bf16.mxu0 0
          %459 = vmatpush1.bf16.msra.mxu0 0
          %460 = vmatprep.mubr.bf16.mxu0 0
          %461 = vmatmul.mubr.bf16.gmra.mrb[0].mxu0 %v426
          %v462 = vpop.f32.mrb[0].mxu0
          %v463 = vadd.f32 0.0, %v462
          %v464 = vpop.f32.mrb[0].mxu0
          %v465 = vpop.f32.mrb[0].mxu0
          %v466 = vpop.f32.mrb[0].mxu0
          %467 = vdwg.mxu0
          %v468 = vlaneseq
          %v469 = vshrl.u32 %v468, 7
          %v470 = vsub.s32 2, %v469
          %v471 = vrot.slane %v370, %v470
          %v472 = vadd.f32 %v463, %v471
          %473 = vst.msk [vmem:[#allocation2] sm:$0xff] %vm376, %v472
          %v474 = vlaneseq
          %v475 = vshrl.u32 %v474, 7
          %v476 = vsub.s32 3, %v475
          %v477 = vrot.slane %v370, %v476
          %479 = vrot.lane.b32.xlu0 %v477, 32
          %v480 = vpop.permute.xlu0 %479
          %v482 = vadd.f32 %v463, %v480
          %v483 = vpack.c.bf16 %v482, %v482
          %v485 = vunpack.c.l.b16 %v483
          %v486 = vpack.c.b16 %v485, %v485
          %487 = vrot.lane.b32.xlu0 %v486, 96
          %v488 = vpop.permute.xlu0 %487
          %vm490 = vcmask 257024
          %491 = vst.msk [vmem:[#allocation3] sm:$0xf] %vm490, %v488
          %v492 = vlaneseq
          %v493 = vshrl.u32 %v492, 7
          %v494 = vsub.s32 4, %v493
          %v495 = vrot.slane %v370, %v494
          %497 = vrot.lane.b32.xlu0 %v495, 64
          %v498 = vpop.permute.xlu0 %497
          %v500 = vadd.f32 %v463, %v498
          %v501 = vpack.c.bf16 %v500, %v500
          %v503 = vunpack.c.l.b16 %v501
          %v504 = vpack.c.b16 %v503, %v503
          %505 = vrot.lane.b32.xlu0 %v504, 64
          %v506 = vpop.permute.xlu0 %505
          %508 = vst.msk [vmem:[#allocation4] sm:$0xf] %vm490, %v506
        $region64: #{encoder_layer_forward.2} parent=39 // pred_fallthru
          _
        %s509 = smul.u32 %s36, 8
        %v510 = vld [vmem:[%s319] sm:$0x1]
        %v511 = vunpack.c.l.bf16 %v510
        %s512 = scalar_lea.vmem [#allocation2], %s509
        %v513 = vld [vmem:[%s512] sm:$0xff]
        %v514 = vpack.c.bf16 %v513, %v513
        %v515 = vld [vmem:[#allocation3] sm:$0xf]
        %v516 = vld [vmem:[#allocation4] sm:$0xf]
        %vm517 = vcmask 64512
        %v519 = vsel %vm517, %v514, 0
        %v522 = vsel %vm517, %v515, 0
        %524 = vmatprep.subr.bf16.mxu0 0
        %525 = vmatpush1.bf16.xpose.msra.mxu0 %v522
        %526 = vmatprep.subr.bf16.mxu0 0
        %527 = vmatpush1.bf16.xpose.msra.mxu0 0
        %528 = vmatprep.subr.bf16.mxu0 0
        %529 = vmatpush1.bf16.xpose.msra.mxu0 0
        %530 = vmatprep.subr.bf16.mxu0 0
        %531 = vmatpush1.bf16.xpose.msra.mxu0 0
        %532 = vmatprep.subr.bf16.mxu0 0
        %533 = vmatpush1.bf16.xpose.msra.mxu0 0
        %534 = vmatprep.subr.bf16.mxu0 0
        %535 = vmatpush1.bf16.xpose.msra.mxu0 0
        %536 = vmatprep.subr.bf16.mxu0 0
        %537 = vmatpush1.bf16.xpose.msra.mxu0 0
        %538 = vmatprep.subr.bf16.mxu0 0
        %539 = vmatpush1.bf16.xpose.msra.mxu0 0
        %540 = vmatprep.subr.bf16.mxu0 0
        %541 = vmatpush1.bf16.xpose.msra.mxu0 0
        %542 = vmatprep.subr.bf16.mxu0 0
        %543 = vmatpush1.bf16.xpose.msra.mxu0 0
        %544 = vmatprep.subr.bf16.mxu0 0
        %545 = vmatpush1.bf16.xpose.msra.mxu0 0
        %546 = vmatprep.subr.bf16.mxu0 0
        %547 = vmatpush1.bf16.xpose.msra.mxu0 0
        %548 = vmatprep.subr.bf16.mxu0 0
        %549 = vmatpush1.bf16.xpose.msra.mxu0 0
        %550 = vmatprep.subr.bf16.mxu0 0
        %551 = vmatpush1.bf16.xpose.msra.mxu0 0
        %552 = vmatprep.subr.bf16.mxu0 0
        %553 = vmatpush1.bf16.xpose.msra.mxu0 0
        %554 = vmatprep.subr.bf16.mxu0 0
        %555 = vmatpush1.bf16.xpose.msra.mxu0 0
        %556 = vmatprep.mubr.bf16.mxu0 0
        %557 = vmatmul.mubr.bf16.gmra.mrb[0].mxu0 %v519
        %v558 = vpop.f32.mrb[0].mxu0
        %v559 = vadd.f32 0.0, %v558
        %v560 = vpop.f32.mrb[0].mxu0
        %v561 = vpop.f32.mrb[0].mxu0
        %v562 = vpop.f32.mrb[0].mxu0
        %563 = vdwg.mxu0
        %v564 = vmul.f32 %v559, 0.35355338
        %v565 = vlaneseq
        %v566 = vshrl.u32 %v565, 7
        %v567 = vsub.s32 0, %v566
        %v568 = vrot.slane %v511, %v567
        %v569 = vadd.f32 %v564, %v568
        %v570 = vsel %vm517, %v569, -inf
        %571 = vmax.xlane.f32.xlu0 %v570
        %v572 = vpop.xlane.xlu0 %571
        %v573 = vsub.f32 %v569, %v572
        %v574 = vmul.f32 %v573, 1.442695
        %v575 = vpow.pop %v574
        %v576 = vsel %vm517, %v575, 0.0
        %577 = vadd.xlane.f32.xlu0 %v576
        %v578 = vpop.xlane.xlu0 %577
        %v579 = vrcp.pop %v578
        %v580 = vmul.f32 %v575, %v579
        %581 = vst.msk [vmem:[%s368] sm:$0xff] %vm517, %v580
        %v582 = vpack.c.bf16 %v580, %v580
        %v584 = vsel %vm517, %v582, 0
        %vm586 = vcmask 1043456
        %v588 = vsel %vm586, %v516, 0
        %590 = vmatprep.subr.bf16.mxu0 0
        %591 = vmatpush1.bf16.msra.mxu0 %v588
        %592 = vmatprep.subr.bf16.mxu0 0
        %593 = vmatpush1.bf16.msra.mxu0 0
        %594 = vmatprep.subr.bf16.mxu0 0
        %595 = vmatpush1.bf16.msra.mxu0 0
        %596 = vmatprep.subr.bf16.mxu0 0
        %597 = vmatpush1.bf16.msra.mxu0 0
        %598 = vmatprep.subr.bf16.mxu0 0
        %599 = vmatpush1.bf16.msra.mxu0 0
        %600 = vmatprep.subr.bf16.mxu0 0
        %601 = vmatpush1.bf16.msra.mxu0 0
        %602 = vmatprep.subr.bf16.mxu0 0
        %603 = vmatpush1.bf16.msra.mxu0 0
        %604 = vmatprep.subr.bf16.mxu0 0
        %605 = vmatpush1.bf16.msra.mxu0 0
        %606 = vmatprep.subr.bf16.mxu0 0
        %607 = vmatpush1.bf16.msra.mxu0 0
        %608 = vmatprep.subr.bf16.mxu0 0
        %609 = vmatpush1.bf16.msra.mxu0 0
        %610 = vmatprep.subr.bf16.mxu0 0
        %611 = vmatpush1.bf16.msra.mxu0 0
        %612 = vmatprep.subr.bf16.mxu0 0
        %613 = vmatpush1.bf16.msra.mxu0 0
        %614 = vmatprep.subr.bf16.mxu0 0
        %615 = vmatpush1.bf16.msra.mxu0 0
        %616 = vmatprep.subr.bf16.mxu0 0
        %617 = vmatpush1.bf16.msra.mxu0 0
        %618 = vmatprep.subr.bf16.mxu0 0
        %619 = vmatpush1.bf16.msra.mxu0 0
        %620 = vmatprep.subr.bf16.mxu0 0
        %621 = vmatpush1.bf16.msra.mxu0 0
        %622 = vmatprep.mubr.bf16.mxu0 0
        %623 = vmatmul.mubr.bf16.gmra.mrb[0].mxu0 %v584
        %v624 = vpop.f32.mrb[0].mxu0
        %v625 = vadd.f32 0.0, %v624
        %v626 = vpop.f32.mrb[0].mxu0
        %v627 = vpop.f32.mrb[0].mxu0
        %v628 = vpop.f32.mrb[0].mxu0
        %629 = vdwg.mxu0
        %630 = vst.msk [vmem:[#allocation5] sm:$0xff] %vm517, %v625
        %632 = vrot.lane.b32.xlu0 %v514, 120
        %v633 = vpop.permute.xlu0 %632
        %v635 = vunpack.c.l.b16 %v515
        %v636 = vpack.c.b16 %v635, %v635
        %637 = vrot.lane.b32.xlu0 %v636, 120
        %v638 = vpop.permute.xlu0 %637
        %v640 = vsel %vm517, %v633, 0
        %v643 = vsel %vm517, %v638, 0
        %645 = vmatprep.subr.bf16.mxu0 0
        %646 = vmatpush1.bf16.xpose.msra.mxu0 %v643
        %647 = vmatprep.subr.bf16.mxu0 0
        %648 = vmatpush1.bf16.xpose.msra.mxu0 0
        %649 = vmatprep.subr.bf16.mxu0 0
        %650 = vmatpush1.bf16.xpose.msra.mxu0 0
        %651 = vmatprep.subr.bf16.mxu0 0
        %652 = vmatpush1.bf16.xpose.msra.mxu0 0
        %653 = vmatprep.subr.bf16.mxu0 0
        %654 = vmatpush1.bf16.xpose.msra.mxu0 0
        %655 = vmatprep.subr.bf16.mxu0 0
        %656 = vmatpush1.bf16.xpose.msra.mxu0 0
        %657 = vmatprep.subr.bf16.mxu0 0
        %658 = vmatpush1.bf16.xpose.msra.mxu0 0
        %659 = vmatprep.subr.bf16.mxu0 0
        %660 = vmatpush1.bf16.xpose.msra.mxu0 0
        %661 = vmatprep.subr.bf16.mxu0 0
        %662 = vmatpush1.bf16.xpose.msra.mxu0 0
        %663 = vmatprep.subr.bf16.mxu0 0
        %664 = vmatpush1.bf16.xpose.msra.mxu0 0
        %665 = vmatprep.subr.bf16.mxu0 0
        %666 = vmatpush1.bf16.xpose.msra.mxu0 0
        %667 = vmatprep.subr.bf16.mxu0 0
        %668 = vmatpush1.bf16.xpose.msra.mxu0 0
        %669 = vmatprep.subr.bf16.mxu0 0
        %670 = vmatpush1.bf16.xpose.msra.mxu0 0
        %671 = vmatprep.subr.bf16.mxu0 0
        %672 = vmatpush1.bf16.xpose.msra.mxu0 0
        %673 = vmatprep.subr.bf16.mxu0 0
        %674 = vmatpush1.bf16.xpose.msra.mxu0 0
        %675 = vmatprep.subr.bf16.mxu0 0
        %676 = vmatpush1.bf16.xpose.msra.mxu0 0
        %677 = vmatprep.mubr.bf16.mxu0 0
        %678 = vmatmul.mubr.bf16.gmra.mrb[0].mxu0 %v640
        %v679 = vpop.f32.mrb[0].mxu0
        %v680 = vadd.f32 0.0, %v679
        %v681 = vpop.f32.mrb[0].mxu0
        %v682 = vpop.f32.mrb[0].mxu0
        %v683 = vpop.f32.mrb[0].mxu0
        %684 = vdwg.mxu0
        %v685 = vmul.f32 %v680, 0.35355338
        %v686 = vadd.f32 %v685, %v568
        %v687 = vsel %vm517, %v686, -inf
        %688 = vmax.xlane.f32.xlu0 %v687
        %v689 = vpop.xlane.xlu0 %688
        %v690 = vsub.f32 %v686, %v689
        %v691 = vmul.f32 %v690, 1.442695
        %v692 = vpow.pop %v691
        %v693 = vsel %vm517, %v692, 0.0
        %694 = vadd.xlane.f32.xlu0 %v693
        %v695 = vpop.xlane.xlu0 %694
        %v696 = vrcp.pop %v695
        %v697 = vmul.f32 %v692, %v696
        %s698 = scalar_lea.vmem %s368, 8 [#allocation16]
        %699 = vst.msk [vmem:[%s698] sm:$0xff] %vm517, %v697
        %v700 = vpack.c.bf16 %v697, %v697
        %v702 = vunpack.c.l.b16 %v516
        %v703 = vpack.c.b16 %v702, %v702
        %704 = vrot.lane.b32.xlu0 %v703, 120
        %v705 = vpop.permute.xlu0 %704
        %v707 = vsel %vm517, %v700, 0
        %v710 = vsel %vm586, %v705, 0
        %712 = vmatprep.subr.bf16.mxu0 0
        %713 = vmatpush1.bf16.msra.mxu0 %v710
        %714 = vmatprep.subr.bf16.mxu0 0
        %715 = vmatpush1.bf16.msra.mxu0 0
        %716 = vmatprep.subr.bf16.mxu0 0
        %717 = vmatpush1.bf16.msra.mxu0 0
        %718 = vmatprep.subr.bf16.mxu0 0
        %719 = vmatpush1.bf16.msra.mxu0 0
        %720 = vmatprep.subr.bf16.mxu0 0
        %721 = vmatpush1.bf16.msra.mxu0 0
        %722 = vmatprep.subr.bf16.mxu0 0
        %723 = vmatpush1.bf16.msra.mxu0 0
        %724 = vmatprep.subr.bf16.mxu0 0
        %725 = vmatpush1.bf16.msra.mxu0 0
        %726 = vmatprep.subr.bf16.mxu0 0
        %727 = vmatpush1.bf16.msra.mxu0 0
        %728 = vmatprep.subr.bf16.mxu0 0
        %729 = vmatpush1.bf16.msra.mxu0 0
        %730 = vmatprep.subr.bf16.mxu0 0
        %731 = vmatpush1.bf16.msra.mxu0 0
        %732 = vmatprep.subr.bf16.mxu0 0
        %733 = vmatpush1.bf16.msra.mxu0 0
        %734 = vmatprep.subr.bf16.mxu0 0
        %735 = vmatpush1.bf16.msra.mxu0 0
        %736 = vmatprep.subr.bf16.mxu0 0
        %737 = vmatpush1.bf16.msra.mxu0 0
        %738 = vmatprep.subr.bf16.mxu0 0
        %739 = vmatpush1.bf16.msra.mxu0 0
        %740 = vmatprep.subr.bf16.mxu0 0
        %741 = vmatpush1.bf16.msra.mxu0 0
        %742 = vmatprep.subr.bf16.mxu0 0
        %743 = vmatpush1.bf16.msra.mxu0 0
        %744 = vmatprep.mubr.bf16.mxu0 0
        %745 = vmatmul.mubr.bf16.gmra.mrb[0].mxu0 %v707
        %v746 = vpop.f32.mrb[0].mxu0
        %v747 = vadd.f32 0.0, %v746
        %v748 = vpop.f32.mrb[0].mxu0
        %v749 = vpop.f32.mrb[0].mxu0
        %v750 = vpop.f32.mrb[0].mxu0
        %751 = vdwg.mxu0
        %753 = vrot.lane.b32.xlu0 %v747, 8
        %v754 = vpop.permute.xlu0 %753
        %vm756 = vcmask 130112
        %757 = vst.msk [vmem:[#allocation5] sm:$0xff] %vm756, %v754
        %758 = vrot.lane.b32.xlu0 %v514, 112
        %v759 = vpop.permute.xlu0 %758
        %760 = vrot.lane.b32.xlu0 %v636, 112
        %v761 = vpop.permute.xlu0 %760
        %v763 = vsel %vm517, %v759, 0
        %v766 = vsel %vm517, %v761, 0
        %768 = vmatprep.subr.bf16.mxu0 0
        %769 = vmatpush1.bf16.xpose.msra.mxu0 %v766
        %770 = vmatprep.subr.bf16.mxu0 0
        %771 = vmatpush1.bf16.xpose.msra.mxu0 0
        %772 = vmatprep.subr.bf16.mxu0 0
        %773 = vmatpush1.bf16.xpose.msra.mxu0 0
        %774 = vmatprep.subr.bf16.mxu0 0
        %775 = vmatpush1.bf16.xpose.msra.mxu0 0
        %776 = vmatprep.subr.bf16.mxu0 0
        %777 = vmatpush1.bf16.xpose.msra.mxu0 0
        %778 = vmatprep.subr.bf16.mxu0 0
        %779 = vmatpush1.bf16.xpose.msra.mxu0 0
        %780 = vmatprep.subr.bf16.mxu0 0
        %781 = vmatpush1.bf16.xpose.msra.mxu0 0
        %782 = vmatprep.subr.bf16.mxu0 0
        %783 = vmatpush1.bf16.xpose.msra.mxu0 0
        %784 = vmatprep.subr.bf16.mxu0 0
        %785 = vmatpush1.bf16.xpose.msra.mxu0 0
        %786 = vmatprep.subr.bf16.mxu0 0
        %787 = vmatpush1.bf16.xpose.msra.mxu0 0
        %788 = vmatprep.subr.bf16.mxu0 0
        %789 = vmatpush1.bf16.xpose.msra.mxu0 0
        %790 = vmatprep.subr.bf16.mxu0 0
        %791 = vmatpush1.bf16.xpose.msra.mxu0 0
        %792 = vmatprep.subr.bf16.mxu0 0
        %793 = vmatpush1.bf16.xpose.msra.mxu0 0
        %794 = vmatprep.subr.bf16.mxu0 0
        %795 = vmatpush1.bf16.xpose.msra.mxu0 0
        %796 = vmatprep.subr.bf16.mxu0 0
        %797 = vmatpush1.bf16.xpose.msra.mxu0 0
        %798 = vmatprep.subr.bf16.mxu0 0
        %799 = vmatpush1.bf16.xpose.msra.mxu0 0
        %800 = vmatprep.mubr.bf16.mxu0 0
        %801 = vmatmul.mubr.bf16.gmra.mrb[0].mxu0 %v763
        %v802 = vpop.f32.mrb[0].mxu0
        %v803 = vadd.f32 0.0, %v802
        %v804 = vpop.f32.mrb[0].mxu0
        %v805 = vpop.f32.mrb[0].mxu0
        %v806 = vpop.f32.mrb[0].mxu0
        %807 = vdwg.mxu0
        %v808 = vmul.f32 %v803, 0.35355338
        %v809 = vadd.f32 %v808, %v568
        %v810 = vsel %vm517, %v809, -inf
        %811 = vmax.xlane.f32.xlu0 %v810
        %v812 = vpop.xlane.xlu0 %811
        %v813 = vsub.f32 %v809, %v812
        %v814 = vmul.f32 %v813, 1.442695
        %v815 = vpow.pop %v814
        %v816 = vsel %vm517, %v815, 0.0
        %817 = vadd.xlane.f32.xlu0 %v816
        %v818 = vpop.xlane.xlu0 %817
        %v819 = vrcp.pop %v818
        %v820 = vmul.f32 %v815, %v819
        %s821 = scalar_lea.vmem %s368, 16 [#allocation16]
        %822 = vst.msk [vmem:[%s821] sm:$0xff] %vm517, %v820
        %v823 = vpack.c.bf16 %v820, %v820
        %824 = vrot.lane.b32.xlu0 %v703, 112
        %v825 = vpop.permute.xlu0 %824
        %v827 = vsel %vm517, %v823, 0
        %v830 = vsel %vm586, %v825, 0
        %832 = vmatprep.subr.bf16.mxu0 0
        %833 = vmatpush1.bf16.msra.mxu0 %v830
        %834 = vmatprep.subr.bf16.mxu0 0
        %835 = vmatpush1.bf16.msra.mxu0 0
        %836 = vmatprep.subr.bf16.mxu0 0
        %837 = vmatpush1.bf16.msra.mxu0 0
        %838 = vmatprep.subr.bf16.mxu0 0
        %839 = vmatpush1.bf16.msra.mxu0 0
        %840 = vmatprep.subr.bf16.mxu0 0
        %841 = vmatpush1.bf16.msra.mxu0 0
        %842 = vmatprep.subr.bf16.mxu0 0
        %843 = vmatpush1.bf16.msra.mxu0 0
        %844 = vmatprep.subr.bf16.mxu0 0
        %845 = vmatpush1.bf16.msra.mxu0 0
        %846 = vmatprep.subr.bf16.mxu0 0
        %847 = vmatpush1.bf16.msra.mxu0 0
        %848 = vmatprep.subr.bf16.mxu0 0
        %849 = vmatpush1.bf16.msra.mxu0 0
        %850 = vmatprep.subr.bf16.mxu0 0
        %851 = vmatpush1.bf16.msra.mxu0 0
        %852 = vmatprep.subr.bf16.mxu0 0
        %853 = vmatpush1.bf16.msra.mxu0 0
        %854 = vmatprep.subr.bf16.mxu0 0
        %855 = vmatpush1.bf16.msra.mxu0 0
        %856 = vmatprep.subr.bf16.mxu0 0
        %857 = vmatpush1.bf16.msra.mxu0 0
        %858 = vmatprep.subr.bf16.mxu0 0
        %859 = vmatpush1.bf16.msra.mxu0 0
        %860 = vmatprep.subr.bf16.mxu0 0
        %861 = vmatpush1.bf16.msra.mxu0 0
        %862 = vmatprep.subr.bf16.mxu0 0
        %863 = vmatpush1.bf16.msra.mxu0 0
        %864 = vmatprep.mubr.bf16.mxu0 0
        %865 = vmatmul.mubr.bf16.gmra.mrb[0].mxu0 %v827
        %v866 = vpop.f32.mrb[0].mxu0
        %v867 = vadd.f32 0.0, %v866
        %v868 = vpop.f32.mrb[0].mxu0
        %v869 = vpop.f32.mrb[0].mxu0
        %v870 = vpop.f32.mrb[0].mxu0
        %871 = vdwg.mxu0
        %873 = vrot.lane.b32.xlu0 %v867, 16
        %v874 = vpop.permute.xlu0 %873
        %vm876 = vcmask 195712
        %877 = vst.msk [vmem:[#allocation5] sm:$0xff] %vm876, %v874
        %878 = vrot.lane.b32.xlu0 %v514, 104
        %v879 = vpop.permute.xlu0 %878
        %880 = vrot.lane.b32.xlu0 %v636, 104
        %v881 = vpop.permute.xlu0 %880
        %v883 = vsel %vm517, %v879, 0
        %v886 = vsel %vm517, %v881, 0
        %888 = vmatprep.subr.bf16.mxu0 0
        %889 = vmatpush1.bf16.xpose.msra.mxu0 %v886
        %890 = vmatprep.subr.bf16.mxu0 0
        %891 = vmatpush1.bf16.xpose.msra.mxu0 0
        %892 = vmatprep.subr.bf16.mxu0 0
        %893 = vmatpush1.bf16.xpose.msra.mxu0 0
        %894 = vmatprep.subr.bf16.mxu0 0
        %895 = vmatpush1.bf16.xpose.msra.mxu0 0
        %896 = vmatprep.subr.bf16.mxu0 0
        %897 = vmatpush1.bf16.xpose.msra.mxu0 0
        %898 = vmatprep.subr.bf16.mxu0 0
        %899 = vmatpush1.bf16.xpose.msra.mxu0 0
        %900 = vmatprep.subr.bf16.mxu0 0
        %901 = vmatpush1.bf16.xpose.msra.mxu0 0
        %902 = vmatprep.subr.bf16.mxu0 0
        %903 = vmatpush1.bf16.xpose.msra.mxu0 0
        %904 = vmatprep.subr.bf16.mxu0 0
        %905 = vmatpush1.bf16.xpose.msra.mxu0 0
        %906 = vmatprep.subr.bf16.mxu0 0
        %907 = vmatpush1.bf16.xpose.msra.mxu0 0
        %908 = vmatprep.subr.bf16.mxu0 0
        %909 = vmatpush1.bf16.xpose.msra.mxu0 0
        %910 = vmatprep.subr.bf16.mxu0 0
        %911 = vmatpush1.bf16.xpose.msra.mxu0 0
        %912 = vmatprep.subr.bf16.mxu0 0
        %913 = vmatpush1.bf16.xpose.msra.mxu0 0
        %914 = vmatprep.subr.bf16.mxu0 0
        %915 = vmatpush1.bf16.xpose.msra.mxu0 0
        %916 = vmatprep.subr.bf16.mxu0 0
        %917 = vmatpush1.bf16.xpose.msra.mxu0 0
        %918 = vmatprep.subr.bf16.mxu0 0
        %919 = vmatpush1.bf16.xpose.msra.mxu0 0
        %920 = vmatprep.mubr.bf16.mxu0 0
        %921 = vmatmul.mubr.bf16.gmra.mrb[0].mxu0 %v883
        %v922 = vpop.f32.mrb[0].mxu0
        %v923 = vadd.f32 0.0, %v922
        %v924 = vpop.f32.mrb[0].mxu0
        %v925 = vpop.f32.mrb[0].mxu0
        %v926 = vpop.f32.mrb[0].mxu0
        %927 = vdwg.mxu0
        %v928 = vmul.f32 %v923, 0.35355338
        %v929 = vadd.f32 %v928, %v568
        %v930 = vsel %vm517, %v929, -inf
        %931 = vmax.xlane.f32.xlu0 %v930
        %v932 = vpop.xlane.xlu0 %931
        %v933 = vsub.f32 %v929, %v932
        %v934 = vmul.f32 %v933, 1.442695
        %v935 = vpow.pop %v934
        %v936 = vsel %vm517, %v935, 0.0
        %937 = vadd.xlane.f32.xlu0 %v936
        %v938 = vpop.xlane.xlu0 %937
        %v939 = vrcp.pop %v938
        %v940 = vmul.f32 %v935, %v939
        %s941 = scalar_lea.vmem %s368, 24 [#allocation16]
        %942 = vst.msk [vmem:[%s941] sm:$0xff] %vm517, %v940
        %v943 = vpack.c.bf16 %v940, %v940
        %944 = vrot.lane.b32.xlu0 %v703, 104
        %v945 = vpop.permute.xlu0 %944
        %v947 = vsel %vm517, %v943, 0
        %v950 = vsel %vm586, %v945, 0
        %952 = vmatprep.subr.bf16.mxu0 0
        %953 = vmatpush1.bf16.msra.mxu0 %v950
        %954 = vmatprep.subr.bf16.mxu0 0
        %955 = vmatpush1.bf16.msra.mxu0 0
        %956 = vmatprep.subr.bf16.mxu0 0
        %957 = vmatpush1.bf16.msra.mxu0 0
        %958 = vmatprep.subr.bf16.mxu0 0
        %959 = vmatpush1.bf16.msra.mxu0 0
        %960 = vmatprep.subr.bf16.mxu0 0
        %961 = vmatpush1.bf16.msra.mxu0 0
        %962 = vmatprep.subr.bf16.mxu0 0
        %963 = vmatpush1.bf16.msra.mxu0 0
        %964 = vmatprep.subr.bf16.mxu0 0
        %965 = vmatpush1.bf16.msra.mxu0 0
        %966 = vmatprep.subr.bf16.mxu0 0
        %967 = vmatpush1.bf16.msra.mxu0 0
        %968 = vmatprep.subr.bf16.mxu0 0
        %969 = vmatpush1.bf16.msra.mxu0 0
        %970 = vmatprep.subr.bf16.mxu0 0
        %971 = vmatpush1.bf16.msra.mxu0 0
        %972 = vmatprep.subr.bf16.mxu0 0
        %973 = vmatpush1.bf16.msra.mxu0 0
        %974 = vmatprep.subr.bf16.mxu0 0
        %975 = vmatpush1.bf16.msra.mxu0 0
        %976 = vmatprep.subr.bf16.mxu0 0
        %977 = vmatpush1.bf16.msra.mxu0 0
        %978 = vmatprep.subr.bf16.mxu0 0
        %979 = vmatpush1.bf16.msra.mxu0 0
        %980 = vmatprep.subr.bf16.mxu0 0
        %981 = vmatpush1.bf16.msra.mxu0 0
        %982 = vmatprep.subr.bf16.mxu0 0
        %983 = vmatpush1.bf16.msra.mxu0 0
        %984 = vmatprep.mubr.bf16.mxu0 0
        %985 = vmatmul.mubr.bf16.gmra.mrb[0].mxu0 %v947
        %v986 = vpop.f32.mrb[0].mxu0
        %v987 = vadd.f32 0.0, %v986
        %v988 = vpop.f32.mrb[0].mxu0
        %v989 = vpop.f32.mrb[0].mxu0
        %v990 = vpop.f32.mrb[0].mxu0
        %991 = vdwg.mxu0
        %993 = vrot.lane.b32.xlu0 %v987, 24
        %v994 = vpop.permute.xlu0 %993
        %vm996 = vcmask 261312
        %997 = vst.msk [vmem:[#allocation5] sm:$0xff] %vm996, %v994
        %v998 = vld [vmem:[#allocation5] sm:$0xff]
        %v999 = vpack.c.bf16 %v998, %v998
        %v1000 = vld [vmem:[#allocation12] sm:$0xf]
        %v1001 = vld [vmem:[#allocation12 + $0x4] sm:$0xf]
        %v1002 = vld [vmem:[#allocation12 + $0x8] sm:$0xf]
        %v1003 = vld [vmem:[#allocation12 + $0xc] sm:$0xf]
        %v1004 = vlaneseq
        %v1005 = vshrl.u32 %v1004, 7
        %v1006 = vsub.s32 5, %v1005
        %v1007 = vrot.slane %v370, %v1006
        %v1012 = vunpack.c.l.b16 %v1000
        %v1013 = vunpack.c.l.b16 %v1001
        %v1014 = vunpack.c.l.b16 %v1002
        %v1015 = vunpack.c.l.b16 %v1003
        %v1016 = vpack.c.b16 %v1013, %v1012
        %v1017 = vpack.c.b16 %v1015, %v1014
        %vm1020 = vcmask 261120
        %v1022 = vsel %vm1020, %v999, 0
        %1024 = vmatprep.subr.bf16.mxu0 0
        %1025 = vmatpush1.bf16.msra.mxu0 %v1016
        %1026 = vmatprep.subr.bf16.mxu0 0
        %1027 = vmatpush1.bf16.msra.mxu0 %v1017
        %1028 = vmatprep.subr.bf16.mxu0 0
        %1029 = vmatpush1.bf16.msra.mxu0 0
        %1030 = vmatprep.subr.bf16.mxu0 0
        %1031 = vmatpush1.bf16.msra.mxu0 0
        %1032 = vmatprep.subr.bf16.mxu0 0
        %1033 = vmatpush1.bf16.msra.mxu0 0
        %1034 = vmatprep.subr.bf16.mxu0 0
        %1035 = vmatpush1.bf16.msra.mxu0 0
        %1036 = vmatprep.subr.bf16.mxu0 0
        %1037 = vmatpush1.bf16.msra.mxu0 0
        %1038 = vmatprep.subr.bf16.mxu0 0
        %1039 = vmatpush1.bf16.msra.mxu0 0
        %1040 = vmatprep.subr.bf16.mxu0 0
        %1041 = vmatpush1.bf16.msra.mxu0 0
        %1042 = vmatprep.subr.bf16.mxu0 0
        %1043 = vmatpush1.bf16.msra.mxu0 0
        %1044 = vmatprep.subr.bf16.mxu0 0
        %1045 = vmatpush1.bf16.msra.mxu0 0
        %1046 = vmatprep.subr.bf16.mxu0 0
        %1047 = vmatpush1.bf16.msra.mxu0 0
        %1048 = vmatprep.subr.bf16.mxu0 0
        %1049 = vmatpush1.bf16.msra.mxu0 0
        %1050 = vmatprep.subr.bf16.mxu0 0
        %1051 = vmatpush1.bf16.msra.mxu0 0
        %1052 = vmatprep.subr.bf16.mxu0 0
        %1053 = vmatpush1.bf16.msra.mxu0 0
        %1054 = vmatprep.subr.bf16.mxu0 0
        %1055 = vmatpush1.bf16.msra.mxu0 0
        %1056 = vmatprep.mubr.bf16.mxu0 0
        %1057 = vmatmul.mubr.bf16.gmra.mrb[0].mxu0 %v1022
        %v1058 = vpop.f32.mrb[0].mxu0
        %v1059 = vadd.f32 %v1007, %v1058
        %v1060 = vpop.f32.mrb[0].mxu0
        %v1061 = vpop.f32.mrb[0].mxu0
        %v1062 = vpop.f32.mrb[0].mxu0
        %1063 = vdwg.mxu0
        %s1064 = scalar_lea.vmem %s311, %s509 [#allocation6]
        %v1065 = vld [vmem:[%s1064] sm:$0xff]
        %v1066 = vadd.f32 %v1065, %v1059
        %1067 = vst.msk [vmem:[%s361] sm:$0xff] %vm1020, %v1066
        %s1068 = sand.u32 %s168, 1
        %s1069 = scalar_lea.sflag [#allocation8], %s1068
        %s1070 = sand.u32 %s168, 1
        %s1071 = smul.addr %s1070, 8
        %s1072 = scalar_lea.vmem [#allocation15], %s1071
        %s1073 = sand.u32 %s196, 1
        %s1074 = scalar_lea.sflag [#allocation17], %s1073
        %s1075 = sand.u32 %s196, 1
        %s1076 = smul.addr %s1075, 32
        %s1077 = scalar_lea.vmem [#allocation16], %s1076
        // Predicated region
        $region65: #{encoder_layer_forward.2} parent=39 // pred_check
          %p1078 = pneg %p178
        $region66: #{encoder_layer_forward.2} parent=39 // pred_check_branch
          %1080 = sbr.rel (%p1078) target = $region68
        $region67: #{encoder_layer_forward.2} parent=39 // pred_region
          %s1082 = ssub.s32 128, 128
          %1083 = vsyncadd %s1069, %s1082
          %s1084 = sadd.s32 %s36, %s35
          %s1085 = smul.addr %s1084, 128
          %s1086 = scalar_lea.hbm %s5, %s1085
          %s1088 = sshll.u32 %s1072, 4
          %s1089 = int_to_ptr.vmem [resolvable:$true] %s1088
          %1091 = dma.vmem_to_hbm [thread:$0]  %s1089, 128, %s1086, %s1069
        $region68: #{encoder_layer_forward.2} parent=39 // pred_fallthru
          _
        // Predicated region
        $region69: #{encoder_layer_forward.2} parent=39 // pred_check
          %p1092 = pneg %p206
        $region70: #{encoder_layer_forward.2} parent=39 // pred_check_branch
          %1094 = sbr.rel (%p1092) target = $region72
        $region71: #{encoder_layer_forward.2} parent=39 // pred_region
          %s1096 = ssub.s32 512, 512
          %1097 = vsyncadd %s1074, %s1096
          %s1098 = smul.addr %s35, 4
          %s1099 = sadd.s32 %s36, %s1098
          %s1100 = smul.addr %s1099, 128
          %s1101 = scalar_lea.hbm %s6, %s1100
          %s1102 = sshll.u32 %s1077, 4
          %s1103 = int_to_ptr.vmem [resolvable:$true] %s1102
          %1108 = dma.vmem_to_hbm [thread:$0]  %s1103, 512, %s1101, %s1074, 128, 128, 8
        $region72: #{encoder_layer_forward.2} parent=39 // pred_fallthru
          _
      $region40: #{encoder_layer_forward.2} parent=5 // pred_fallthru
        _
      %p1109 = scmp.le.s32.totalorder 2, %s26
      // Predicated region
      $region73: #{encoder_layer_forward.2} parent=5 // pred_check
        %p1110 = pneg %p1109
      $region74: #{encoder_layer_forward.2} parent=5 // pred_check_branch
        %1112 = sbr.rel (%p1110) target = $region76
      $region75: #{encoder_layer_forward.2} parent=5 // pred_region
        %s1113 = ssub.s32 %s26, 2
        // Predicated region
        $region77: #{encoder_layer_forward.2} parent=75 // pred_check
          %p1114 = pneg %p184
        $region78: #{encoder_layer_forward.2} parent=75 // pred_check_branch
          %1116 = sbr.rel (%p1114) target = $region80
        $region79: #{encoder_layer_forward.2} parent=75 // pred_region
          %s1117 = sand.u32 %s169, 1
          %s1118 = scalar_lea.sflag [#allocation8], %s1117
          %s1119 = sand.u32 %s169, 1
          %s1120 = smul.addr %s1119, 8
          %s1121 = scalar_lea.vmem [#allocation15], %s1120
          %1122 = dma.done %s1118, 128
        $region80: #{encoder_layer_forward.2} parent=75 // pred_fallthru
          _
        // Predicated region
        $region81: #{encoder_layer_forward.2} parent=75 // pred_check
          %p1123 = pneg %p212
        $region82: #{encoder_layer_forward.2} parent=75 // pred_check_branch
          %1125 = sbr.rel (%p1123) target = $region84
        $region83: #{encoder_layer_forward.2} parent=75 // pred_region
          %s1126 = sand.u32 %s197, 1
          %s1127 = scalar_lea.sflag [#allocation17], %s1126
          %s1128 = sand.u32 %s197, 1
          %s1129 = smul.addr %s1128, 32
          %s1130 = scalar_lea.vmem [#allocation16], %s1129
          %1131 = dma.done %s1127, 512
        $region84: #{encoder_layer_forward.2} parent=75 // pred_fallthru
          _
      $region76: #{encoder_layer_forward.2} parent=5 // pred_fallthru
        _
    $region6: #{encoder_layer_forward.2} parent=1 // loop_footer
      %s30 = sadd.s32 1, %s26
    $region7: #{encoder_layer_forward.2} parent=1 // loop_footer_branch
      %25 = sbr.rel target = $region3
    $region8: #{encoder_layer_forward.2} parent=1 // loop_exit
      _
    %1132 = vsyncpa [#allocation7], 1
    %s1133 = scalar_lea.sflag [#allocation7], 1
    %1134 = vsyncpa %s1133, 1
    %1135 = vsyncpa [#allocation10], 1
    %s1136 = scalar_lea.sflag [#allocation10], 1
    %1137 = vsyncpa %s1136, 1
    %1138 = vsyncpa [#allocation13], 1
    %1139 = vsyncpa [#allocation8], 1
    %s1140 = scalar_lea.sflag [#allocation8], 1
    %1141 = vsyncpa %s1140, 1
    %1142 = vsyncpa [#allocation17], 1
    %s1143 = scalar_lea.sflag [#allocation17], 1
    %1144 = vsyncpa %s1143, 1

</llo_original>
